<compile_context>
chip_gen: v5e
topology: v5e:2x2
jax: 0.10.0
libtpu: 0.0.40
codegen_flags: <defaults>
</compile_context>

<pallas_src>
import math

import jax
import jax.numpy as jnp
from jax.experimental import pallas as pl
from jax.experimental.pallas import tpu as pltpu

_LANE = 128   # each GRU gate padded to one full lane tile
_TB = 8       # timesteps per grid step -> one (8,128) f32 output vreg per block


# --------------------------------------------------------------------------- kernel
def _encoder_gru_block_kernel(tok_ref,   # SMEM (T_pad,) int32 — scalar-prefetched token ids
                              h0_ref,    # VMEM (1, HP)        — initial hidden (padded)
                              p_ref,     # VMEM (VP, 3*HP)     — emb @ W_ih^T + fused bias
                              whh_ref,   # VMEM (HP, 3*HP)     — W_hh^T, per-gate lane-padded
                              bhn_ref,   # VMEM (1, HP)        — b_hn (n-gate hidden bias)
                              out_ref,   # VMEM (TB, HP)       — hidden rows for this block
                              h_scr):    # VMEM (1, HP) scratch — carried hidden state
    HP = h_scr.shape[-1]
    TB = out_ref.shape[0]
    VP = p_ref.shape[0]
    blk = pl.program_id(0)

    @pl.when(blk == 0)
    def _():
        h_scr[...] = h0_ref[...]

    base = blk * TB

    # ---- block prologue (off the serial h chain) ---------------------------------
    # Gather the pre-projected embedding rows GI[t] = emb[tok_t] @ W_ih^T + b_i for all
    # TB timesteps with a single one-hot (TB,VP)@(VP,3HP) MXU dot.
    lane = jax.lax.broadcasted_iota(jnp.int32, (TB, VP), 1)
    sub = jax.lax.broadcasted_iota(jnp.int32, (TB, VP), 0)
    onehot = jnp.zeros((TB, VP), jnp.float32)
    for t in range(TB):                                   # static unroll; SMEM scalar reads
        onehot = jnp.where((sub == t) & (lane == tok_ref[base + t]), 1.0, onehot)
    gi_blk = jnp.dot(onehot, p_ref[...], preferred_element_type=jnp.float32)  # (TB, 3*HP)

    # ---- serial recurrence: only h @ W_hh^T + elementwise gates per step ----------
    whh = whh_ref[...]        # hoisted loads (single load op, reused by all TB steps)
    bhn = bhn_ref[...]
    h = h_scr[...]
    for t in range(TB):       # static unroll; all slices static & 128-lane aligned
        gi = gi_blk[t:t + 1, :]                           # (1, 3*HP)
        gh = jnp.dot(h, whh, preferred_element_type=jnp.float32)
        r = jax.nn.sigmoid(gi[:, 0 * HP:1 * HP] + gh[:, 0 * HP:1 * HP])
        z = jax.nn.sigmoid(gi[:, 1 * HP:2 * HP] + gh[:, 1 * HP:2 * HP])
        n = jnp.tanh(gi[:, 2 * HP:3 * HP] + r * (gh[:, 2 * HP:3 * HP] + bhn))
        h = (1.0 - z) * n + z * h                         # padded lanes stay exactly 0
        out_ref[t:t + 1, :] = h   # VMEM store; HBM writeback is one lane-dense (TB,HP) DMA
    h_scr[...] = h


# ------------------------------------------------------------- one-time param prep
def prepare_encoder_params(emb_table, w_ih, w_hh, b_ih, b_hh):
    """Hoists ALL layout + input-projection work out of the per-call path.
    PyTorch layouts in: emb (V, E), w_ih (3H, E), w_hh (3H, H), biases (3H,)."""
    V, E = emb_table.shape
    H = w_hh.shape[1]
    assert w_ih.shape == (3 * H, E) and w_hh.shape == (3 * H, H)
    HP = ((H + _LANE - 1) // _LANE) * _LANE
    VP = ((max(V, 8) + 7) // 8) * 8

    f32 = jnp.float32
    emb = emb_table.astype(f32)
    w_ih = w_ih.astype(f32)
    w_hh = w_hh.astype(f32)
    b_ih = b_ih.astype(f32)
    b_hh = b_hh.astype(f32)

    def gate(w, g):                      # rows of PyTorch weight for gate g
        return w[g * H:(g + 1) * H]

    def pad_cols(m):                     # (K, H) -> (K, HP), zero-padded lanes
        return jnp.pad(m, ((0, 0), (0, HP - H)))

    def pad_vec(v):                      # (H,) -> (1, HP)
        return jnp.pad(v, (0, HP - H)).reshape(1, HP)

    # W_ih^T / W_hh^T with gates concatenated, each padded to a full 128-lane block.
    wih_t = jnp.concatenate([pad_cols(gate(w_ih, g).T) for g in range(3)], axis=1)  # (E, 3HP)
    whh_t = jnp.concatenate([pad_cols(gate(w_hh, g).T) for g in range(3)], axis=1)  # (H, 3HP)
    whh_t = jnp.pad(whh_t, ((0, HP - H), (0, 0)))                                   # (HP, 3HP)

    b_ir, b_iz, b_in = (b_ih[g * H:(g + 1) * H] for g in range(3))
    b_hr, b_hz, b_hn = (b_hh[g * H:(g + 1) * H] for g in range(3))
    bi = jnp.concatenate(
        [pad_vec(b_ir + b_hr), pad_vec(b_iz + b_hz), pad_vec(b_in)], axis=1)         # (1, 3HP)

    # Fuse embedding lookup + input projection + input-side bias into one table:
    #   proj_emb[v] = emb[v] @ W_ih^T (per-gate padded) + bi   == GI for token v.
    proj = jnp.dot(emb, wih_t, precision=jax.lax.Precision.HIGHEST) + bi             # (V, 3HP)
    proj = jnp.pad(proj, ((0, VP - V), (0, 0)))                                      # (VP, 3HP)

    return dict(proj_emb=proj, whh=whh_t, bhn=pad_vec(b_hn),
                V=V, VP=VP, E=E, H=H, HP=HP)


# ----------------------------------------------------------------------- pallas call
@jax.jit
def _encode_sequence_padded(tokens_pad, h0_pad, proj_emb, whh, bhn):
    T_pad = tokens_pad.shape[0]
    VP, G3 = proj_emb.shape
    HP = h0_pad.shape[-1]
    n_blocks = T_pad // _TB

    grid_spec = pltpu.PrefetchScalarGridSpec(
        num_scalar_prefetch=1,          # token ids -> SMEM, visible in-kernel
        grid=(n_blocks,),
        in_specs=[
            # Constant index_maps -> fetched once, VMEM-resident across all blocks.
            pl.BlockSpec((1, HP), lambda b, tok: (0, 0)),       # h0
            pl.BlockSpec((VP, G3), lambda b, tok: (0, 0)),      # proj_emb (emb@W_ih^T + b_i)
            pl.BlockSpec((HP, G3), lambda b, tok: (0, 0)),      # W_hh^T (padded)
            pl.BlockSpec((1, HP), lambda b, tok: (0, 0)),       # b_hn
        ],
        out_specs=pl.BlockSpec((_TB, HP), lambda b, tok: (b, 0)),   # lane-dense (TB,HP) blocks
        scratch_shapes=[pltpu.VMEM((1, HP), jnp.float32)],          # carried hidden state
    )

    return pl.pallas_call(
        _encoder_gru_block_kernel,
        out_shape=jax.ShapeDtypeStruct((T_pad, HP), jnp.float32),
        grid_spec=grid_spec,
        compiler_params=pltpu.CompilerParams(
            dimension_semantics=("arbitrary",)),   # sequential: hidden carries across blocks
    )(tokens_pad, h0_pad, proj_emb, whh, bhn)


# --------------------------------------------------------------------- public wrappers
def encoder_encode_sequence(tokens, gru_hidden, params):
    """Runs T sequential Encoder.forward steps fused in one kernel.
    tokens: (T,) int32; gru_hidden: (1, 1, H).  Returns ((T, 1, H) outputs, (1, 1, H) hidden)."""
    H, HP, V = params["H"], params["HP"], params["V"]
    tokens = jnp.clip(tokens.astype(jnp.int32).reshape(-1), 0, V - 1)   # OOB guard (remaps)
    T = int(tokens.shape[0])
    T_pad = ((T + _TB - 1) // _TB) * _TB
    tokens_pad = jnp.pad(tokens, (0, T_pad - T))      # pad id 0 (valid); padded rows discarded
    h0_pad = jnp.pad(gru_hidden.reshape(1, H).astype(jnp.float32), ((0, 0), (0, HP - H)))
    out_slab = _encode_sequence_padded(tokens_pad, h0_pad, params["proj_emb"],
                                       params["whh"], params["bhn"])
    outputs = out_slab[:T, :H].reshape(T, 1, H)
    hidden = out_slab[T - 1, :H].reshape(1, 1, H)
    return outputs, hidden


def encoder_forward(token, gru_hidden, params):
    """Exact Encoder.forward semantics: one embedding lookup + one GRU step (T = 1)."""
    outputs, hidden = encoder_encode_sequence(token.reshape(1), gru_hidden, params)
    return outputs.reshape(1, 1, params["H"]), hidden


# ------------------------------------------------------------------------- reference
def _reference_sequence(tokens, gru_hidden, emb_table, w_ih, w_hh, b_ih, b_hh):
    """Pure-JAX step loop with PyTorch nn.GRU semantics."""
    H = gru_hidden.shape[-1]
    h = gru_hidden.reshape(1, H)
    outs = []
    for t in range(int(tokens.shape[0])):
        x = emb_table[tokens[t]].reshape(1, -1)
        gi = x @ w_ih.T + b_ih
        gh = h @ w_hh.T + b_hh
        r = jax.nn.sigmoid(gi[:, :H] + gh[:, :H])
        z = jax.nn.sigmoid(gi[:, H:2 * H] + gh[:, H:2 * H])
        n = jnp.tanh(gi[:, 2 * H:] + r * gh[:, 2 * H:])
        h = (1.0 - z) * n + z * h
        outs.append(h)
    return jnp.stack(outs, axis=0), h.reshape(1, 1, H)


# ------------------------------------------------------------------------------ main
if __name__ == "__main__":
    vocab_size = 16
    word_embedding_size = 32
    gru_hidden_size = 32          # == word_embedding_size (initHidden assumes this)
    seq_len = 8

    key = jax.random.PRNGKey(0)
    k_emb, k_wih, k_whh, k_tok, k_seq, k_seq2, k_b1, k_b2 = jax.random.split(key, 8)

    def xavier_uniform(k, shape):
        fan_out, fan_in = shape
        bound = math.sqrt(6.0 / (fan_in + fan_out))
        return jax.random.uniform(k, shape, jnp.float32, -bound, bound)

    # Parameter init matching Encoder.__init__: xavier_uniform 2-D weights, zero biases.
    emb_table = xavier_uniform(k_emb, (vocab_size, word_embedding_size))
    w_ih = xavier_uniform(k_wih, (3 * gru_hidden_size, word_embedding_size))
    w_hh = xavier_uniform(k_whh, (3 * gru_hidden_size, gru_hidden_size))
    b_ih = jnp.zeros((3 * gru_hidden_size,), jnp.float32)
    b_hh = jnp.zeros((3 * gru_hidden_size,), jnp.float32)

    params = prepare_encoder_params(emb_table, w_ih, w_hh, b_ih, b_hh)
    h0 = jnp.zeros((1, 1, gru_hidden_size), jnp.float32)   # Encoder.initHidden()

    # ---- single-step forward (exact Encoder.forward) ----
    token = jax.random.randint(k_tok, (1,), 0, vocab_size, dtype=jnp.int32)
    out, h_new = encoder_forward(token, h0, params)
    jax.block_until_ready((out, h_new))
    ref_outs, ref_h = _reference_sequence(token, h0, emb_table, w_ih, w_hh, b_ih, b_hh)
    assert out.shape == (1, 1, gru_hidden_size) and h_new.shape == (1, 1, gru_hidden_size)
    assert jnp.allclose(out, ref_outs.reshape(1, 1, -1), atol=1e-5), "single-step output mismatch"
    assert jnp.allclose(h_new, ref_h, atol=1e-5), "single-step hidden mismatch"

    # ---- fused sequence encoding: seq_len GRU steps in one pallas_call (one block) ----
    tokens = jax.random.randint(k_seq, (seq_len,), 0, vocab_size, dtype=jnp.int32)
    outs, h_final = encoder_encode_sequence(tokens, h0, params)
    jax.block_until_ready((outs, h_final))
    ref_outs, ref_h = _reference_sequence(tokens, h0, emb_table, w_ih, w_hh, b_ih, b_hh)
    assert outs.shape == (seq_len, 1, gru_hidden_size)
    assert jnp.allclose(outs, ref_outs, atol=1e-5), "sequence outputs mismatch"
    assert jnp.allclose(h_final, ref_h, atol=1e-5), "final hidden mismatch"

    # ---- non-zero biases + ragged multi-block length (tests bias fusion AND the
    #      hidden-state carry across TB-blocks / output padding path) ----
    seq_len2 = 19                                   # -> T_pad = 24, 3 grid blocks
    tokens2 = jax.random.randint(k_seq2, (seq_len2,), 0, vocab_size, dtype=jnp.int32)
    b_ih_nz = 0.1 * jax.random.normal(k_b1, (3 * gru_hidden_size,), jnp.float32)
    b_hh_nz = 0.1 * jax.random.normal(k_b2, (3 * gru_hidden_size,), jnp.float32)
    params_nz = prepare_encoder_params(emb_table, w_ih, w_hh, b_ih_nz, b_hh_nz)
    outs2, h2 = encoder_encode_sequence(tokens2, h0, params_nz)
    jax.block_until_ready((outs2, h2))
    ref_outs2, ref_h2 = _reference_sequence(tokens2, h0, emb_table, w_ih, w_hh,
                                            b_ih_nz, b_hh_nz)
    assert outs2.shape == (seq_len2, 1, gru_hidden_size)
    assert jnp.allclose(outs2, ref_outs2, atol=1e-5), "multi-block outputs mismatch"
    assert jnp.allclose(h2, ref_h2, atol=1e-5), "multi-block hidden mismatch"

    print("KERNEL_OK")
</pallas_src>

<mosaic_0001>
module attributes {stable_mosaic.version = 11 : i64} {
  func.func @_encoder_gru_block_kernel(%arg0: i32, %arg1: memref<8xi32, #tpu.memory_space<smem>>, %arg2: memref<1x128xf32, #tpu.memory_space<vmem>>, %arg3: memref<16x384xf32, #tpu.memory_space<vmem>>, %arg4: memref<128x384xf32, #tpu.memory_space<vmem>>, %arg5: memref<1x128xf32, #tpu.memory_space<vmem>>, %arg6: memref<8x128xf32, #tpu.memory_space<vmem>>, %arg7: memref<1x128xf32, #tpu.memory_space<vmem>>) attributes {dimension_semantics = [#tpu.dimension_semantics<arbitrary>], iteration_bounds = array<i64: 1>, scalar_prefetch = 1 : i64, scratch_operands = 1 : i64, tpu.core_type = #tpu.core_type<tc>, window_params = [{pipeline_mode = #tpu.pipeline_mode<synchronous>, transform_indices = @transform_0, window_bounds = array<i64: 1, 128>}, {pipeline_mode = #tpu.pipeline_mode<synchronous>, transform_indices = @transform_1, window_bounds = array<i64: 16, 384>}, {pipeline_mode = #tpu.pipeline_mode<synchronous>, transform_indices = @transform_2, window_bounds = array<i64: 128, 384>}, {pipeline_mode = #tpu.pipeline_mode<synchronous>, transform_indices = @transform_3, window_bounds = array<i64: 1, 128>}, {transform_indices = @transform_4, window_bounds = array<i64: 8, 128>}]} {
    %c0_i32 = arith.constant 0 : i32
    %0 = arith.cmpi eq, %arg0, %c0_i32 : i32
    %1 = arith.extui %0 : i1 to i32
    %c0_i32_0 = arith.constant 0 : i32
    %2 = arith.cmpi ne, %1, %c0_i32_0 : i32
    scf.if %2 {
      %c0_69 = arith.constant 0 : index
      %c0_70 = arith.constant 0 : index
      %333 = vector.load %arg2[%c0_69, %c0_70] : memref<1x128xf32, #tpu.memory_space<vmem>>, vector<1x128xf32>
      %c0_71 = arith.constant 0 : index
      %c0_72 = arith.constant 0 : index
      %334 = vector.load %arg7[%c0_71, %c0_72] : memref<1x128xf32, #tpu.memory_space<vmem>>, vector<1x128xf32>
      tpu.vector_store %arg7[%c0_71, %c0_72], %333 {strides = array<i32>} : memref<1x128xf32, #tpu.memory_space<vmem>>, vector<1x128xf32>,
    } else {
    }
    %c8_i32 = arith.constant 8 : i32
    %3 = arith.muli %arg0, %c8_i32 : i32
    %4 = tpu.iota {dimensions = array<i32: 1>} : vector<8x16xi32>
    %5 = tpu.iota {dimensions = array<i32: 0>} : vector<8x16xi32>
    %cst = arith.constant 0.000000e+00 : f32
    %6 = vector.broadcast %cst : f32 to vector<8x16xf32>
    %c0_i32_1 = arith.constant 0 : i32
    %7 = vector.broadcast %c0_i32_1 : i32 to vector<8x16xi32>
    %8 = arith.cmpi eq, %5, %7 : vector<8x16xi32>
    %c0_i32_2 = arith.constant 0 : i32
    %9 = arith.addi %3, %c0_i32_2 : i32
    %10 = arith.index_cast %9 : i32 to index
    %11 = memref.load %arg1[%10] : memref<8xi32, #tpu.memory_space<smem>>
    %12 = vector.broadcast %11 : i32 to vector<8x16xi32>
    %13 = arith.cmpi eq, %4, %12 : vector<8x16xi32>
    %14 = arith.andi %8, %13 : vector<8x16xi1>
    %cst_3 = arith.constant 1.000000e+00 : f32
    %15 = vector.broadcast %cst_3 : f32 to vector<8x16xf32>
    %16 = arith.select %14, %15, %6 : vector<8x16xi1>, vector<8x16xf32>
    %c1_i32 = arith.constant 1 : i32
    %17 = vector.broadcast %c1_i32 : i32 to vector<8x16xi32>
    %18 = arith.cmpi eq, %5, %17 : vector<8x16xi32>
    %c1_i32_4 = arith.constant 1 : i32
    %19 = arith.addi %3, %c1_i32_4 : i32
    %20 = arith.index_cast %19 : i32 to index
    %21 = memref.load %arg1[%20] : memref<8xi32, #tpu.memory_space<smem>>
    %22 = vector.broadcast %21 : i32 to vector<8x16xi32>
    %23 = arith.cmpi eq, %4, %22 : vector<8x16xi32>
    %24 = arith.andi %18, %23 : vector<8x16xi1>
    %cst_5 = arith.constant 1.000000e+00 : f32
    %25 = vector.broadcast %cst_5 : f32 to vector<8x16xf32>
    %26 = arith.select %24, %25, %16 : vector<8x16xi1>, vector<8x16xf32>
    %c2_i32 = arith.constant 2 : i32
    %27 = vector.broadcast %c2_i32 : i32 to vector<8x16xi32>
    %28 = arith.cmpi eq, %5, %27 : vector<8x16xi32>
    %c2_i32_6 = arith.constant 2 : i32
    %29 = arith.addi %3, %c2_i32_6 : i32
    %30 = arith.index_cast %29 : i32 to index
    %31 = memref.load %arg1[%30] : memref<8xi32, #tpu.memory_space<smem>>
    %32 = vector.broadcast %31 : i32 to vector<8x16xi32>
    %33 = arith.cmpi eq, %4, %32 : vector<8x16xi32>
    %34 = arith.andi %28, %33 : vector<8x16xi1>
    %cst_7 = arith.constant 1.000000e+00 : f32
    %35 = vector.broadcast %cst_7 : f32 to vector<8x16xf32>
    %36 = arith.select %34, %35, %26 : vector<8x16xi1>, vector<8x16xf32>
    %c3_i32 = arith.constant 3 : i32
    %37 = vector.broadcast %c3_i32 : i32 to vector<8x16xi32>
    %38 = arith.cmpi eq, %5, %37 : vector<8x16xi32>
    %c3_i32_8 = arith.constant 3 : i32
    %39 = arith.addi %3, %c3_i32_8 : i32
    %40 = arith.index_cast %39 : i32 to index
    %41 = memref.load %arg1[%40] : memref<8xi32, #tpu.memory_space<smem>>
    %42 = vector.broadcast %41 : i32 to vector<8x16xi32>
    %43 = arith.cmpi eq, %4, %42 : vector<8x16xi32>
    %44 = arith.andi %38, %43 : vector<8x16xi1>
    %cst_9 = arith.constant 1.000000e+00 : f32
    %45 = vector.broadcast %cst_9 : f32 to vector<8x16xf32>
    %46 = arith.select %44, %45, %36 : vector<8x16xi1>, vector<8x16xf32>
    %c4_i32 = arith.constant 4 : i32
    %47 = vector.broadcast %c4_i32 : i32 to vector<8x16xi32>
    %48 = arith.cmpi eq, %5, %47 : vector<8x16xi32>
    %c4_i32_10 = arith.constant 4 : i32
    %49 = arith.addi %3, %c4_i32_10 : i32
    %50 = arith.index_cast %49 : i32 to index
    %51 = memref.load %arg1[%50] : memref<8xi32, #tpu.memory_space<smem>>
    %52 = vector.broadcast %51 : i32 to vector<8x16xi32>
    %53 = arith.cmpi eq, %4, %52 : vector<8x16xi32>
    %54 = arith.andi %48, %53 : vector<8x16xi1>
    %cst_11 = arith.constant 1.000000e+00 : f32
    %55 = vector.broadcast %cst_11 : f32 to vector<8x16xf32>
    %56 = arith.select %54, %55, %46 : vector<8x16xi1>, vector<8x16xf32>
    %c5_i32 = arith.constant 5 : i32
    %57 = vector.broadcast %c5_i32 : i32 to vector<8x16xi32>
    %58 = arith.cmpi eq, %5, %57 : vector<8x16xi32>
    %c5_i32_12 = arith.constant 5 : i32
    %59 = arith.addi %3, %c5_i32_12 : i32
    %60 = arith.index_cast %59 : i32 to index
    %61 = memref.load %arg1[%60] : memref<8xi32, #tpu.memory_space<smem>>
    %62 = vector.broadcast %61 : i32 to vector<8x16xi32>
    %63 = arith.cmpi eq, %4, %62 : vector<8x16xi32>
    %64 = arith.andi %58, %63 : vector<8x16xi1>
    %cst_13 = arith.constant 1.000000e+00 : f32
    %65 = vector.broadcast %cst_13 : f32 to vector<8x16xf32>
    %66 = arith.select %64, %65, %56 : vector<8x16xi1>, vector<8x16xf32>
    %c6_i32 = arith.constant 6 : i32
    %67 = vector.broadcast %c6_i32 : i32 to vector<8x16xi32>
    %68 = arith.cmpi eq, %5, %67 : vector<8x16xi32>
    %c6_i32_14 = arith.constant 6 : i32
    %69 = arith.addi %3, %c6_i32_14 : i32
    %70 = arith.index_cast %69 : i32 to index
    %71 = memref.load %arg1[%70] : memref<8xi32, #tpu.memory_space<smem>>
    %72 = vector.broadcast %71 : i32 to vector<8x16xi32>
    %73 = arith.cmpi eq, %4, %72 : vector<8x16xi32>
    %74 = arith.andi %68, %73 : vector<8x16xi1>
    %cst_15 = arith.constant 1.000000e+00 : f32
    %75 = vector.broadcast %cst_15 : f32 to vector<8x16xf32>
    %76 = arith.select %74, %75, %66 : vector<8x16xi1>, vector<8x16xf32>
    %c7_i32 = arith.constant 7 : i32
    %77 = vector.broadcast %c7_i32 : i32 to vector<8x16xi32>
    %78 = arith.cmpi eq, %5, %77 : vector<8x16xi32>
    %c7_i32_16 = arith.constant 7 : i32
    %79 = arith.addi %3, %c7_i32_16 : i32
    %80 = arith.index_cast %79 : i32 to index
    %81 = memref.load %arg1[%80] : memref<8xi32, #tpu.memory_space<smem>>
    %82 = vector.broadcast %81 : i32 to vector<8x16xi32>
    %83 = arith.cmpi eq, %4, %82 : vector<8x16xi32>
    %84 = arith.andi %78, %83 : vector<8x16xi1>
    %cst_17 = arith.constant 1.000000e+00 : f32
    %85 = vector.broadcast %cst_17 : f32 to vector<8x16xf32>
    %86 = arith.select %84, %85, %76 : vector<8x16xi1>, vector<8x16xf32>
    %c0 = arith.constant 0 : index
    %c0_18 = arith.constant 0 : index
    %87 = vector.load %arg3[%c0, %c0_18] : memref<16x384xf32, #tpu.memory_space<vmem>>, vector<16x384xf32>
    %cst_19 = arith.constant dense<0.000000e+00> : vector<8x384xf32>
    %88 = tpu.matmul %86, %87, %cst_19 {dimension_numbers = #tpu.dot_dimension_numbers<[1], [0], [0], [1], [0, 0, 1, 1], [], []>} : vector<8x16xf32>, vector<16x384xf32>, vector<8x384xf32> -> vector<8x384xf32>
    %c0_20 = arith.constant 0 : index
    %c0_21 = arith.constant 0 : index
    %89 = vector.load %arg4[%c0_20, %c0_21] : memref<128x384xf32, #tpu.memory_space<vmem>>, vector<128x384xf32>
    %c0_22 = arith.constant 0 : index
    %c0_23 = arith.constant 0 : index
    %90 = vector.load %arg5[%c0_22, %c0_23] : memref<1x128xf32, #tpu.memory_space<vmem>>, vector<1x128xf32>
    %c0_24 = arith.constant 0 : index
    %c0_25 = arith.constant 0 : index
    %91 = vector.load %arg7[%c0_24, %c0_25] : memref<1x128xf32, #tpu.memory_space<vmem>>, vector<1x128xf32>
    %92 = vector.extract_strided_slice %88 {offsets = [0, 0], sizes = [1, 384], strides = [1, 1]} : vector<8x384xf32> to vector<1x384xf32>
    %cst_26 = arith.constant dense<0.000000e+00> : vector<1x384xf32>
    %93 = tpu.matmul %91, %89, %cst_26 {dimension_numbers = #tpu.dot_dimension_numbers<[1], [0], [0], [1], [0, 0, 1, 1], [], []>} : vector<1x128xf32>, vector<128x384xf32>, vector<1x384xf32> -> vector<1x384xf32>
    %94 = vector.extract_strided_slice %92 {offsets = [0, 0], sizes = [1, 128], strides = [1, 1]} : vector<1x384xf32> to vector<1x128xf32>
    %95 = vector.extract_strided_slice %93 {offsets = [0, 0], sizes = [1, 128], strides = [1, 1]} : vector<1x384xf32> to vector<1x128xf32>
    %96 = arith.addf %94, %95 : vector<1x128xf32>
    %97 = arith.negf %96 : vector<1x128xf32>
    %98 = math.exp %97 : vector<1x128xf32>
    %cst_27 = arith.constant 1.000000e+00 : f32
    %99 = vector.broadcast %cst_27 : f32 to vector<1x128xf32>
    %100 = arith.addf %99, %98 : vector<1x128xf32>
    %101 = arith.divf %99, %100 : vector<1x128xf32>
    %102 = vector.extract_strided_slice %92 {offsets = [0, 128], sizes = [1, 128], strides = [1, 1]} : vector<1x384xf32> to vector<1x128xf32>
    %103 = vector.extract_strided_slice %93 {offsets = [0, 128], sizes = [1, 128], strides = [1, 1]} : vector<1x384xf32> to vector<1x128xf32>
    %104 = arith.addf %102, %103 : vector<1x128xf32>
    %105 = arith.negf %104 : vector<1x128xf32>
    %106 = math.exp %105 : vector<1x128xf32>
    %cst_28 = arith.constant 1.000000e+00 : f32
    %107 = vector.broadcast %cst_28 : f32 to vector<1x128xf32>
    %108 = arith.addf %107, %106 : vector<1x128xf32>
    %109 = arith.divf %107, %108 : vector<1x128xf32>
    %110 = vector.extract_strided_slice %92 {offsets = [0, 256], sizes = [1, 128], strides = [1, 1]} : vector<1x384xf32> to vector<1x128xf32>
    %111 = vector.extract_strided_slice %93 {offsets = [0, 256], sizes = [1, 128], strides = [1, 1]} : vector<1x384xf32> to vector<1x128xf32>
    %112 = arith.addf %111, %90 : vector<1x128xf32>
    %113 = arith.mulf %101, %112 : vector<1x128xf32>
    %114 = arith.addf %110, %113 : vector<1x128xf32>
    %115 = math.tanh %114 : vector<1x128xf32>
    %cst_29 = arith.constant 1.000000e+00 : f32
    %116 = vector.broadcast %cst_29 : f32 to vector<1x128xf32>
    %117 = arith.subf %116, %109 : vector<1x128xf32>
    %118 = arith.mulf %117, %115 : vector<1x128xf32>
    %119 = arith.mulf %109, %91 : vector<1x128xf32>
    %120 = arith.addf %118, %119 : vector<1x128xf32>
    %c0_30 = arith.constant 0 : index
    %c0_31 = arith.constant 0 : index
    %121 = vector.load %arg6[%c0_30, %c0_31] : memref<8x128xf32, #tpu.memory_space<vmem>>, vector<1x128xf32>
    tpu.vector_store %arg6[%c0_30, %c0_31], %120 {strides = array<i32>} : memref<8x128xf32, #tpu.memory_space<vmem>>, vector<1x128xf32>,
    %122 = vector.extract_strided_slice %88 {offsets = [1, 0], sizes = [1, 384], strides = [1, 1]} : vector<8x384xf32> to vector<1x384xf32>
    %cst_32 = arith.constant dense<0.000000e+00> : vector<1x384xf32>
    %123 = tpu.matmul %120, %89, %cst_32 {dimension_numbers = #tpu.dot_dimension_numbers<[1], [0], [0], [1], [0, 0, 1, 1], [], []>} : vector<1x128xf32>, vector<128x384xf32>, vector<1x384xf32> -> vector<1x384xf32>
    %124 = vector.extract_strided_slice %122 {offsets = [0, 0], sizes = [1, 128], strides = [1, 1]} : vector<1x384xf32> to vector<1x128xf32>
    %125 = vector.extract_strided_slice %123 {offsets = [0, 0], sizes = [1, 128], strides = [1, 1]} : vector<1x384xf32> to vector<1x128xf32>
    %126 = arith.addf %124, %125 : vector<1x128xf32>
    %127 = arith.negf %126 : vector<1x128xf32>
    %128 = math.exp %127 : vector<1x128xf32>
    %cst_33 = arith.constant 1.000000e+00 : f32
    %129 = vector.broadcast %cst_33 : f32 to vector<1x128xf32>
    %130 = arith.addf %129, %128 : vector<1x128xf32>
    %131 = arith.divf %129, %130 : vector<1x128xf32>
    %132 = vector.extract_strided_slice %122 {offsets = [0, 128], sizes = [1, 128], strides = [1, 1]} : vector<1x384xf32> to vector<1x128xf32>
    %133 = vector.extract_strided_slice %123 {offsets = [0, 128], sizes = [1, 128], strides = [1, 1]} : vector<1x384xf32> to vector<1x128xf32>
    %134 = arith.addf %132, %133 : vector<1x128xf32>
    %135 = arith.negf %134 : vector<1x128xf32>
    %136 = math.exp %135 : vector<1x128xf32>
    %cst_34 = arith.constant 1.000000e+00 : f32
    %137 = vector.broadcast %cst_34 : f32 to vector<1x128xf32>
    %138 = arith.addf %137, %136 : vector<1x128xf32>
    %139 = arith.divf %137, %138 : vector<1x128xf32>
    %140 = vector.extract_strided_slice %122 {offsets = [0, 256], sizes = [1, 128], strides = [1, 1]} : vector<1x384xf32> to vector<1x128xf32>
    %141 = vector.extract_strided_slice %123 {offsets = [0, 256], sizes = [1, 128], strides = [1, 1]} : vector<1x384xf32> to vector<1x128xf32>
    %142 = arith.addf %141, %90 : vector<1x128xf32>
    %143 = arith.mulf %131, %142 : vector<1x128xf32>
    %144 = arith.addf %140, %143 : vector<1x128xf32>
    %145 = math.tanh %144 : vector<1x128xf32>
    %cst_35 = arith.constant 1.000000e+00 : f32
    %146 = vector.broadcast %cst_35 : f32 to vector<1x128xf32>
    %147 = arith.subf %146, %139 : vector<1x128xf32>
    %148 = arith.mulf %147, %145 : vector<1x128xf32>
    %149 = arith.mulf %139, %120 : vector<1x128xf32>
    %150 = arith.addf %148, %149 : vector<1x128xf32>
    %c1 = arith.constant 1 : index
    %c0_36 = arith.constant 0 : index
    %151 = vector.load %arg6[%c1, %c0_36] : memref<8x128xf32, #tpu.memory_space<vmem>>, vector<1x128xf32>
    tpu.vector_store %arg6[%c1, %c0_36], %150 {strides = array<i32>} : memref<8x128xf32, #tpu.memory_space<vmem>>, vector<1x128xf32>,
    %152 = vector.extract_strided_slice %88 {offsets = [2, 0], sizes = [1, 384], strides = [1, 1]} : vector<8x384xf32> to vector<1x384xf32>
    %cst_37 = arith.constant dense<0.000000e+00> : vector<1x384xf32>
    %153 = tpu.matmul %150, %89, %cst_37 {dimension_numbers = #tpu.dot_dimension_numbers<[1], [0], [0], [1], [0, 0, 1, 1], [], []>} : vector<1x128xf32>, vector<128x384xf32>, vector<1x384xf32> -> vector<1x384xf32>
    %154 = vector.extract_strided_slice %152 {offsets = [0, 0], sizes = [1, 128], strides = [1, 1]} : vector<1x384xf32> to vector<1x128xf32>
    %155 = vector.extract_strided_slice %153 {offsets = [0, 0], sizes = [1, 128], strides = [1, 1]} : vector<1x384xf32> to vector<1x128xf32>
    %156 = arith.addf %154, %155 : vector<1x128xf32>
    %157 = arith.negf %156 : vector<1x128xf32>
    %158 = math.exp %157 : vector<1x128xf32>
    %cst_38 = arith.constant 1.000000e+00 : f32
    %159 = vector.broadcast %cst_38 : f32 to vector<1x128xf32>
    %160 = arith.addf %159, %158 : vector<1x128xf32>
    %161 = arith.divf %159, %160 : vector<1x128xf32>
    %162 = vector.extract_strided_slice %152 {offsets = [0, 128], sizes = [1, 128], strides = [1, 1]} : vector<1x384xf32> to vector<1x128xf32>
    %163 = vector.extract_strided_slice %153 {offsets = [0, 128], sizes = [1, 128], strides = [1, 1]} : vector<1x384xf32> to vector<1x128xf32>
    %164 = arith.addf %162, %163 : vector<1x128xf32>
    %165 = arith.negf %164 : vector<1x128xf32>
    %166 = math.exp %165 : vector<1x128xf32>
    %cst_39 = arith.constant 1.000000e+00 : f32
    %167 = vector.broadcast %cst_39 : f32 to vector<1x128xf32>
    %168 = arith.addf %167, %166 : vector<1x128xf32>
    %169 = arith.divf %167, %168 : vector<1x128xf32>
    %170 = vector.extract_strided_slice %152 {offsets = [0, 256], sizes = [1, 128], strides = [1, 1]} : vector<1x384xf32> to vector<1x128xf32>
    %171 = vector.extract_strided_slice %153 {offsets = [0, 256], sizes = [1, 128], strides = [1, 1]} : vector<1x384xf32> to vector<1x128xf32>
    %172 = arith.addf %171, %90 : vector<1x128xf32>
    %173 = arith.mulf %161, %172 : vector<1x128xf32>
    %174 = arith.addf %170, %173 : vector<1x128xf32>
    %175 = math.tanh %174 : vector<1x128xf32>
    %cst_40 = arith.constant 1.000000e+00 : f32
    %176 = vector.broadcast %cst_40 : f32 to vector<1x128xf32>
    %177 = arith.subf %176, %169 : vector<1x128xf32>
    %178 = arith.mulf %177, %175 : vector<1x128xf32>
    %179 = arith.mulf %169, %150 : vector<1x128xf32>
    %180 = arith.addf %178, %179 : vector<1x128xf32>
    %c2 = arith.constant 2 : index
    %c0_41 = arith.constant 0 : index
    %181 = vector.load %arg6[%c2, %c0_41] : memref<8x128xf32, #tpu.memory_space<vmem>>, vector<1x128xf32>
    tpu.vector_store %arg6[%c2, %c0_41], %180 {strides = array<i32>} : memref<8x128xf32, #tpu.memory_space<vmem>>, vector<1x128xf32>,
    %182 = vector.extract_strided_slice %88 {offsets = [3, 0], sizes = [1, 384], strides = [1, 1]} : vector<8x384xf32> to vector<1x384xf32>
    %cst_42 = arith.constant dense<0.000000e+00> : vector<1x384xf32>
    %183 = tpu.matmul %180, %89, %cst_42 {dimension_numbers = #tpu.dot_dimension_numbers<[1], [0], [0], [1], [0, 0, 1, 1], [], []>} : vector<1x128xf32>, vector<128x384xf32>, vector<1x384xf32> -> vector<1x384xf32>
    %184 = vector.extract_strided_slice %182 {offsets = [0, 0], sizes = [1, 128], strides = [1, 1]} : vector<1x384xf32> to vector<1x128xf32>
    %185 = vector.extract_strided_slice %183 {offsets = [0, 0], sizes = [1, 128], strides = [1, 1]} : vector<1x384xf32> to vector<1x128xf32>
    %186 = arith.addf %184, %185 : vector<1x128xf32>
    %187 = arith.negf %186 : vector<1x128xf32>
    %188 = math.exp %187 : vector<1x128xf32>
    %cst_43 = arith.constant 1.000000e+00 : f32
    %189 = vector.broadcast %cst_43 : f32 to vector<1x128xf32>
    %190 = arith.addf %189, %188 : vector<1x128xf32>
    %191 = arith.divf %189, %190 : vector<1x128xf32>
    %192 = vector.extract_strided_slice %182 {offsets = [0, 128], sizes = [1, 128], strides = [1, 1]} : vector<1x384xf32> to vector<1x128xf32>
    %193 = vector.extract_strided_slice %183 {offsets = [0, 128], sizes = [1, 128], strides = [1, 1]} : vector<1x384xf32> to vector<1x128xf32>
    %194 = arith.addf %192, %193 : vector<1x128xf32>
    %195 = arith.negf %194 : vector<1x128xf32>
    %196 = math.exp %195 : vector<1x128xf32>
    %cst_44 = arith.constant 1.000000e+00 : f32
    %197 = vector.broadcast %cst_44 : f32 to vector<1x128xf32>
    %198 = arith.addf %197, %196 : vector<1x128xf32>
    %199 = arith.divf %197, %198 : vector<1x128xf32>
    %200 = vector.extract_strided_slice %182 {offsets = [0, 256], sizes = [1, 128], strides = [1, 1]} : vector<1x384xf32> to vector<1x128xf32>
    %201 = vector.extract_strided_slice %183 {offsets = [0, 256], sizes = [1, 128], strides = [1, 1]} : vector<1x384xf32> to vector<1x128xf32>
    %202 = arith.addf %201, %90 : vector<1x128xf32>
    %203 = arith.mulf %191, %202 : vector<1x128xf32>
    %204 = arith.addf %200, %203 : vector<1x128xf32>
    %205 = math.tanh %204 : vector<1x128xf32>
    %cst_45 = arith.constant 1.000000e+00 : f32
    %206 = vector.broadcast %cst_45 : f32 to vector<1x128xf32>
    %207 = arith.subf %206, %199 : vector<1x128xf32>
    %208 = arith.mulf %207, %205 : vector<1x128xf32>
    %209 = arith.mulf %199, %180 : vector<1x128xf32>
    %210 = arith.addf %208, %209 : vector<1x128xf32>
    %c3 = arith.constant 3 : index
    %c0_46 = arith.constant 0 : index
    %211 = vector.load %arg6[%c3, %c0_46] : memref<8x128xf32, #tpu.memory_space<vmem>>, vector<1x128xf32>
    tpu.vector_store %arg6[%c3, %c0_46], %210 {strides = array<i32>} : memref<8x128xf32, #tpu.memory_space<vmem>>, vector<1x128xf32>,
    %212 = vector.extract_strided_slice %88 {offsets = [4, 0], sizes = [1, 384], strides = [1, 1]} : vector<8x384xf32> to vector<1x384xf32>
    %cst_47 = arith.constant dense<0.000000e+00> : vector<1x384xf32>
    %213 = tpu.matmul %210, %89, %cst_47 {dimension_numbers = #tpu.dot_dimension_numbers<[1], [0], [0], [1], [0, 0, 1, 1], [], []>} : vector<1x128xf32>, vector<128x384xf32>, vector<1x384xf32> -> vector<1x384xf32>
    %214 = vector.extract_strided_slice %212 {offsets = [0, 0], sizes = [1, 128], strides = [1, 1]} : vector<1x384xf32> to vector<1x128xf32>
    %215 = vector.extract_strided_slice %213 {offsets = [0, 0], sizes = [1, 128], strides = [1, 1]} : vector<1x384xf32> to vector<1x128xf32>
    %216 = arith.addf %214, %215 : vector<1x128xf32>
    %217 = arith.negf %216 : vector<1x128xf32>
    %218 = math.exp %217 : vector<1x128xf32>
    %cst_48 = arith.constant 1.000000e+00 : f32
    %219 = vector.broadcast %cst_48 : f32 to vector<1x128xf32>
    %220 = arith.addf %219, %218 : vector<1x128xf32>
    %221 = arith.divf %219, %220 : vector<1x128xf32>
    %222 = vector.extract_strided_slice %212 {offsets = [0, 128], sizes = [1, 128], strides = [1, 1]} : vector<1x384xf32> to vector<1x128xf32>
    %223 = vector.extract_strided_slice %213 {offsets = [0, 128], sizes = [1, 128], strides = [1, 1]} : vector<1x384xf32> to vector<1x128xf32>
    %224 = arith.addf %222, %223 : vector<1x128xf32>
    %225 = arith.negf %224 : vector<1x128xf32>
    %226 = math.exp %225 : vector<1x128xf32>
    %cst_49 = arith.constant 1.000000e+00 : f32
    %227 = vector.broadcast %cst_49 : f32 to vector<1x128xf32>
    %228 = arith.addf %227, %226 : vector<1x128xf32>
    %229 = arith.divf %227, %228 : vector<1x128xf32>
    %230 = vector.extract_strided_slice %212 {offsets = [0, 256], sizes = [1, 128], strides = [1, 1]} : vector<1x384xf32> to vector<1x128xf32>
    %231 = vector.extract_strided_slice %213 {offsets = [0, 256], sizes = [1, 128], strides = [1, 1]} : vector<1x384xf32> to vector<1x128xf32>
    %232 = arith.addf %231, %90 : vector<1x128xf32>
    %233 = arith.mulf %221, %232 : vector<1x128xf32>
    %234 = arith.addf %230, %233 : vector<1x128xf32>
    %235 = math.tanh %234 : vector<1x128xf32>
    %cst_50 = arith.constant 1.000000e+00 : f32
    %236 = vector.broadcast %cst_50 : f32 to vector<1x128xf32>
    %237 = arith.subf %236, %229 : vector<1x128xf32>
    %238 = arith.mulf %237, %235 : vector<1x128xf32>
    %239 = arith.mulf %229, %210 : vector<1x128xf32>
    %240 = arith.addf %238, %239 : vector<1x128xf32>
    %c4 = arith.constant 4 : index
    %c0_51 = arith.constant 0 : index
    %241 = vector.load %arg6[%c4, %c0_51] : memref<8x128xf32, #tpu.memory_space<vmem>>, vector<1x128xf32>
    tpu.vector_store %arg6[%c4, %c0_51], %240 {strides = array<i32>} : memref<8x128xf32, #tpu.memory_space<vmem>>, vector<1x128xf32>,
    %242 = vector.extract_strided_slice %88 {offsets = [5, 0], sizes = [1, 384], strides = [1, 1]} : vector<8x384xf32> to vector<1x384xf32>
    %cst_52 = arith.constant dense<0.000000e+00> : vector<1x384xf32>
    %243 = tpu.matmul %240, %89, %cst_52 {dimension_numbers = #tpu.dot_dimension_numbers<[1], [0], [0], [1], [0, 0, 1, 1], [], []>} : vector<1x128xf32>, vector<128x384xf32>, vector<1x384xf32> -> vector<1x384xf32>
    %244 = vector.extract_strided_slice %242 {offsets = [0, 0], sizes = [1, 128], strides = [1, 1]} : vector<1x384xf32> to vector<1x128xf32>
    %245 = vector.extract_strided_slice %243 {offsets = [0, 0], sizes = [1, 128], strides = [1, 1]} : vector<1x384xf32> to vector<1x128xf32>
    %246 = arith.addf %244, %245 : vector<1x128xf32>
    %247 = arith.negf %246 : vector<1x128xf32>
    %248 = math.exp %247 : vector<1x128xf32>
    %cst_53 = arith.constant 1.000000e+00 : f32
    %249 = vector.broadcast %cst_53 : f32 to vector<1x128xf32>
    %250 = arith.addf %249, %248 : vector<1x128xf32>
    %251 = arith.divf %249, %250 : vector<1x128xf32>
    %252 = vector.extract_strided_slice %242 {offsets = [0, 128], sizes = [1, 128], strides = [1, 1]} : vector<1x384xf32> to vector<1x128xf32>
    %253 = vector.extract_strided_slice %243 {offsets = [0, 128], sizes = [1, 128], strides = [1, 1]} : vector<1x384xf32> to vector<1x128xf32>
    %254 = arith.addf %252, %253 : vector<1x128xf32>
    %255 = arith.negf %254 : vector<1x128xf32>
    %256 = math.exp %255 : vector<1x128xf32>
    %cst_54 = arith.constant 1.000000e+00 : f32
    %257 = vector.broadcast %cst_54 : f32 to vector<1x128xf32>
    %258 = arith.addf %257, %256 : vector<1x128xf32>
    %259 = arith.divf %257, %258 : vector<1x128xf32>
    %260 = vector.extract_strided_slice %242 {offsets = [0, 256], sizes = [1, 128], strides = [1, 1]} : vector<1x384xf32> to vector<1x128xf32>
    %261 = vector.extract_strided_slice %243 {offsets = [0, 256], sizes = [1, 128], strides = [1, 1]} : vector<1x384xf32> to vector<1x128xf32>
    %262 = arith.addf %261, %90 : vector<1x128xf32>
    %263 = arith.mulf %251, %262 : vector<1x128xf32>
    %264 = arith.addf %260, %263 : vector<1x128xf32>
    %265 = math.tanh %264 : vector<1x128xf32>
    %cst_55 = arith.constant 1.000000e+00 : f32
    %266 = vector.broadcast %cst_55 : f32 to vector<1x128xf32>
    %267 = arith.subf %266, %259 : vector<1x128xf32>
    %268 = arith.mulf %267, %265 : vector<1x128xf32>
    %269 = arith.mulf %259, %240 : vector<1x128xf32>
    %270 = arith.addf %268, %269 : vector<1x128xf32>
    %c5 = arith.constant 5 : index
    %c0_56 = arith.constant 0 : index
    %271 = vector.load %arg6[%c5, %c0_56] : memref<8x128xf32, #tpu.memory_space<vmem>>, vector<1x128xf32>
    tpu.vector_store %arg6[%c5, %c0_56], %270 {strides = array<i32>} : memref<8x128xf32, #tpu.memory_space<vmem>>, vector<1x128xf32>,
    %272 = vector.extract_strided_slice %88 {offsets = [6, 0], sizes = [1, 384], strides = [1, 1]} : vector<8x384xf32> to vector<1x384xf32>
    %cst_57 = arith.constant dense<0.000000e+00> : vector<1x384xf32>
    %273 = tpu.matmul %270, %89, %cst_57 {dimension_numbers = #tpu.dot_dimension_numbers<[1], [0], [0], [1], [0, 0, 1, 1], [], []>} : vector<1x128xf32>, vector<128x384xf32>, vector<1x384xf32> -> vector<1x384xf32>
    %274 = vector.extract_strided_slice %272 {offsets = [0, 0], sizes = [1, 128], strides = [1, 1]} : vector<1x384xf32> to vector<1x128xf32>
    %275 = vector.extract_strided_slice %273 {offsets = [0, 0], sizes = [1, 128], strides = [1, 1]} : vector<1x384xf32> to vector<1x128xf32>
    %276 = arith.addf %274, %275 : vector<1x128xf32>
    %277 = arith.negf %276 : vector<1x128xf32>
    %278 = math.exp %277 : vector<1x128xf32>
    %cst_58 = arith.constant 1.000000e+00 : f32
    %279 = vector.broadcast %cst_58 : f32 to vector<1x128xf32>
    %280 = arith.addf %279, %278 : vector<1x128xf32>
    %281 = arith.divf %279, %280 : vector<1x128xf32>
    %282 = vector.extract_strided_slice %272 {offsets = [0, 128], sizes = [1, 128], strides = [1, 1]} : vector<1x384xf32> to vector<1x128xf32>
    %283 = vector.extract_strided_slice %273 {offsets = [0, 128], sizes = [1, 128], strides = [1, 1]} : vector<1x384xf32> to vector<1x128xf32>
    %284 = arith.addf %282, %283 : vector<1x128xf32>
    %285 = arith.negf %284 : vector<1x128xf32>
    %286 = math.exp %285 : vector<1x128xf32>
    %cst_59 = arith.constant 1.000000e+00 : f32
    %287 = vector.broadcast %cst_59 : f32 to vector<1x128xf32>
    %288 = arith.addf %287, %286 : vector<1x128xf32>
    %289 = arith.divf %287, %288 : vector<1x128xf32>
    %290 = vector.extract_strided_slice %272 {offsets = [0, 256], sizes = [1, 128], strides = [1, 1]} : vector<1x384xf32> to vector<1x128xf32>
    %291 = vector.extract_strided_slice %273 {offsets = [0, 256], sizes = [1, 128], strides = [1, 1]} : vector<1x384xf32> to vector<1x128xf32>
    %292 = arith.addf %291, %90 : vector<1x128xf32>
    %293 = arith.mulf %281, %292 : vector<1x128xf32>
    %294 = arith.addf %290, %293 : vector<1x128xf32>
    %295 = math.tanh %294 : vector<1x128xf32>
    %cst_60 = arith.constant 1.000000e+00 : f32
    %296 = vector.broadcast %cst_60 : f32 to vector<1x128xf32>
    %297 = arith.subf %296, %289 : vector<1x128xf32>
    %298 = arith.mulf %297, %295 : vector<1x128xf32>
    %299 = arith.mulf %289, %270 : vector<1x128xf32>
    %300 = arith.addf %298, %299 : vector<1x128xf32>
    %c6 = arith.constant 6 : index
    %c0_61 = arith.constant 0 : index
    %301 = vector.load %arg6[%c6, %c0_61] : memref<8x128xf32, #tpu.memory_space<vmem>>, vector<1x128xf32>
    tpu.vector_store %arg6[%c6, %c0_61], %300 {strides = array<i32>} : memref<8x128xf32, #tpu.memory_space<vmem>>, vector<1x128xf32>,
    %302 = vector.extract_strided_slice %88 {offsets = [7, 0], sizes = [1, 384], strides = [1, 1]} : vector<8x384xf32> to vector<1x384xf32>
    %cst_62 = arith.constant dense<0.000000e+00> : vector<1x384xf32>
    %303 = tpu.matmul %300, %89, %cst_62 {dimension_numbers = #tpu.dot_dimension_numbers<[1], [0], [0], [1], [0, 0, 1, 1], [], []>} : vector<1x128xf32>, vector<128x384xf32>, vector<1x384xf32> -> vector<1x384xf32>
    %304 = vector.extract_strided_slice %302 {offsets = [0, 0], sizes = [1, 128], strides = [1, 1]} : vector<1x384xf32> to vector<1x128xf32>
    %305 = vector.extract_strided_slice %303 {offsets = [0, 0], sizes = [1, 128], strides = [1, 1]} : vector<1x384xf32> to vector<1x128xf32>
    %306 = arith.addf %304, %305 : vector<1x128xf32>
    %307 = arith.negf %306 : vector<1x128xf32>
    %308 = math.exp %307 : vector<1x128xf32>
    %cst_63 = arith.constant 1.000000e+00 : f32
    %309 = vector.broadcast %cst_63 : f32 to vector<1x128xf32>
    %310 = arith.addf %309, %308 : vector<1x128xf32>
    %311 = arith.divf %309, %310 : vector<1x128xf32>
    %312 = vector.extract_strided_slice %302 {offsets = [0, 128], sizes = [1, 128], strides = [1, 1]} : vector<1x384xf32> to vector<1x128xf32>
    %313 = vector.extract_strided_slice %303 {offsets = [0, 128], sizes = [1, 128], strides = [1, 1]} : vector<1x384xf32> to vector<1x128xf32>
    %314 = arith.addf %312, %313 : vector<1x128xf32>
    %315 = arith.negf %314 : vector<1x128xf32>
    %316 = math.exp %315 : vector<1x128xf32>
    %cst_64 = arith.constant 1.000000e+00 : f32
    %317 = vector.broadcast %cst_64 : f32 to vector<1x128xf32>
    %318 = arith.addf %317, %316 : vector<1x128xf32>
    %319 = arith.divf %317, %318 : vector<1x128xf32>
    %320 = vector.extract_strided_slice %302 {offsets = [0, 256], sizes = [1, 128], strides = [1, 1]} : vector<1x384xf32> to vector<1x128xf32>
    %321 = vector.extract_strided_slice %303 {offsets = [0, 256], sizes = [1, 128], strides = [1, 1]} : vector<1x384xf32> to vector<1x128xf32>
    %322 = arith.addf %321, %90 : vector<1x128xf32>
    %323 = arith.mulf %311, %322 : vector<1x128xf32>
    %324 = arith.addf %320, %323 : vector<1x128xf32>
    %325 = math.tanh %324 : vector<1x128xf32>
    %cst_65 = arith.constant 1.000000e+00 : f32
    %326 = vector.broadcast %cst_65 : f32 to vector<1x128xf32>
    %327 = arith.subf %326, %319 : vector<1x128xf32>
    %328 = arith.mulf %327, %325 : vector<1x128xf32>
    %329 = arith.mulf %319, %300 : vector<1x128xf32>
    %330 = arith.addf %328, %329 : vector<1x128xf32>
    %c7 = arith.constant 7 : index
    %c0_66 = arith.constant 0 : index
    %331 = vector.load %arg6[%c7, %c0_66] : memref<8x128xf32, #tpu.memory_space<vmem>>, vector<1x128xf32>
    tpu.vector_store %arg6[%c7, %c0_66], %330 {strides = array<i32>} : memref<8x128xf32, #tpu.memory_space<vmem>>, vector<1x128xf32>,
    %c0_67 = arith.constant 0 : index
    %c0_68 = arith.constant 0 : index
    %332 = vector.load %arg7[%c0_67, %c0_68] : memref<1x128xf32, #tpu.memory_space<vmem>>, vector<1x128xf32>
    tpu.vector_store %arg7[%c0_67, %c0_68], %330 {strides = array<i32>} : memref<1x128xf32, #tpu.memory_space<vmem>>, vector<1x128xf32>,
    return
  }
  func.func @transform_0(%arg0: i32, %arg1: memref<8xi32, #tpu.memory_space<smem>>) -> (i32, i32) {
    %c0_i32 = arith.constant 0 : i32
    %c0_i32_0 = arith.constant 0 : i32
    %c0_i32_1 = arith.constant 0 : i32
    return %c0_i32, %c0_i32_0 : i32, i32
  }
  func.func @transform_1(%arg0: i32, %arg1: memref<8xi32, #tpu.memory_space<smem>>) -> (i32, i32) {
    %c0_i32 = arith.constant 0 : i32
    %c0_i32_0 = arith.constant 0 : i32
    %c0_i32_1 = arith.constant 0 : i32
    return %c0_i32, %c0_i32_0 : i32, i32
  }
  func.func @transform_2(%arg0: i32, %arg1: memref<8xi32, #tpu.memory_space<smem>>) -> (i32, i32) {
    %c0_i32 = arith.constant 0 : i32
    %c0_i32_0 = arith.constant 0 : i32
    %c0_i32_1 = arith.constant 0 : i32
    return %c0_i32, %c0_i32_0 : i32, i32
  }
  func.func @transform_3(%arg0: i32, %arg1: memref<8xi32, #tpu.memory_space<smem>>) -> (i32, i32) {
    %c0_i32 = arith.constant 0 : i32
    %c0_i32_0 = arith.constant 0 : i32
    %c0_i32_1 = arith.constant 0 : i32
    return %c0_i32, %c0_i32_0 : i32, i32
  }
  func.func @transform_4(%arg0: i32, %arg1: memref<8xi32, #tpu.memory_space<smem>>) -> (i32, i32) {
    %c0_i32 = arith.constant 0 : i32
    %c0_i32_0 = arith.constant 0 : i32
    return %arg0, %c0_i32 : i32, i32
  }
}

</mosaic_0001>

<llo_original>
// kernel: _encode_sequence_padded.1
$region0: #{_encode_sequence_padded.1}
  #allocation0 [shape = 'u32[]', space=smem, size = 0x4, offset = 0x4, fixed_abs, tag = 'smem constant byte address 0x4 - core index']
  #allocation1 [shape = 'u32[72,128]{1,0:T(1,128)}', space=vmem, size = 0x9000, scoped, tag = 'internal scratch']
  #allocation2 [shape = 'f32[1,128]{1,0:T(1,128)}', space=vmem, size = 0x200, scoped, tag = 'scratch operand']
  #allocation3 [shape = 's32[1]{0}', space=sflag, size = 0x4, scoped, tag = 'scoped memory for _encode_sequence_padded.1']
  #allocation4 [shape = 'u8[512]{0}', space=smem, size = 0x200, scoped, tag = 'prefetched SMEM operand 0']
  %s0 = inlined_call_operand.hbm [shape: s32[8], index: 0, kind: input, shape index: {}]
  %s1 = inlined_call_operand.hbm [shape: f32[1,128], index: 1, kind: input, shape index: {}]
  %s2 = inlined_call_operand.hbm [shape: f32[16,384], index: 2, kind: input, shape index: {}]
  %s3 = inlined_call_operand.hbm [shape: f32[128,384], index: 3, kind: input, shape index: {}]
  %s4 = inlined_call_operand.vmem [shape: f32[1,128], index: 4, kind: input, shape index: {}]
  %s5 = inlined_call_operand.hbm [shape: f32[8,128], index: 5, kind: output, shape index: {}]
  %s6 = sld [smem:[#allocation0]]
  $region42: #{_encode_sequence_padded.1} parent=0
    _
  %s8 = ssub.s32 1, %s6
  %s9 = scalar_select 0, %s8, %s6
  %s11 = sshll.u32 %s0, 4
  %s12 = int_to_ptr.hbm [resolvable:$true] %s11
  %14 = dma.hbm_to_smem %s12, 16, [#allocation4], [#allocation3]
  %16 = dma.done [#allocation3], 16
  %17 = sfence
  $region1: #{_encode_sequence_padded.1} parent=0
    #allocation5 [shape = 'u8[512]{0}', space=vmem, size = 0x400, scoped, tag = 'input window, operand 1, single buffered']
    #allocation6 [shape = 's32[1]{0}', space=sflag, size = 0x4, scoped, tag = 'scoped memory for _encode_sequence_padded.1']
    #allocation7 [shape = 's32[1]{0}', space=sflag, size = 0x4, scoped, tag = 'scoped memory for _encode_sequence_padded.1']
    #allocation8 [shape = 'u8[24576]{0}', space=vmem, size = 0x6000, scoped, tag = 'input window, operand 2, single buffered']
    #allocation9 [shape = 's32[1]{0}', space=sflag, size = 0x4, scoped, tag = 'scoped memory for _encode_sequence_padded.1']
    #allocation10 [shape = 'u8[196608]{0}', space=vmem, size = 0x30000, scoped, tag = 'input window, operand 3, single buffered']
    #allocation11 [shape = 'u8[4096]{0}', space=vmem, size = 0x1000, scoped, tag = 'output window, operand 0, single buffered']
    %18 = vsyncpa [#allocation6], 0
    %19 = vsyncpa [#allocation9], 0
    %20 = vsyncpa [#allocation7], 0
    // Predicated region
    $region2: #{_encode_sequence_padded.1} parent=1 // pred_check
      _
    $region3: #{_encode_sequence_padded.1} parent=1 // pred_check_branch
      %22 = sbr.rel (0) target = $region5
    $region4: #{_encode_sequence_padded.1} parent=1 // pred_region
      %24 = vsyncadd [#allocation6], 0
      %s26 = sshll.u32 %s1, 4
      %s27 = int_to_ptr.hbm [resolvable:$true] %s26
      %s28 = sshll.u32 [#allocation5], 4
      %s29 = int_to_ptr.vmem [resolvable:$true] %s28
      %31 = dma.hbm_to_vmem [thread:$0]  %s27, 16, %s29, [#allocation6]
    $region5: #{_encode_sequence_padded.1} parent=1 // pred_fallthru
      _
    // Predicated region
    $region6: #{_encode_sequence_padded.1} parent=1 // pred_check
      _
    $region7: #{_encode_sequence_padded.1} parent=1 // pred_check_branch
      %33 = sbr.rel (0) target = $region9
    $region8: #{_encode_sequence_padded.1} parent=1 // pred_region
      %35 = vsyncadd [#allocation9], 0
      %s36 = sshll.u32 %s2, 4
      %s37 = int_to_ptr.hbm [resolvable:$true] %s36
      %s38 = sshll.u32 [#allocation8], 4
      %s39 = int_to_ptr.vmem [resolvable:$true] %s38
      %44 = dma.hbm_to_vmem [thread:$0]  %s37, 768, %s39, [#allocation9], 384, 384, 24
    $region9: #{_encode_sequence_padded.1} parent=1 // pred_fallthru
      _
    // Predicated region
    $region10: #{_encode_sequence_padded.1} parent=1 // pred_check
      _
    $region11: #{_encode_sequence_padded.1} parent=1 // pred_check_branch
      %46 = sbr.rel (0) target = $region13
    $region12: #{_encode_sequence_padded.1} parent=1 // pred_region
      %48 = vsyncadd [#allocation9], 0
      %s49 = sshll.u32 %s3, 4
      %s50 = int_to_ptr.hbm [resolvable:$true] %s49
      %s51 = sshll.u32 [#allocation10], 4
      %s52 = int_to_ptr.vmem [resolvable:$true] %s51
      %57 = dma.hbm_to_vmem [thread:$0]  %s50, 6144, %s52, [#allocation9], 384, 384, 24
    $region13: #{_encode_sequence_padded.1} parent=1 // pred_fallthru
      _
    // Predicated region
    $region14: #{_encode_sequence_padded.1} parent=1 // pred_check
      _
    $region15: #{_encode_sequence_padded.1} parent=1 // pred_check_branch
      %59 = sbr.rel (0) target = $region17
    $region16: #{_encode_sequence_padded.1} parent=1 // pred_region
      _
    $region17: #{_encode_sequence_padded.1} parent=1 // pred_fallthru
      _
    // Predicated region
    $region18: #{_encode_sequence_padded.1} parent=1 // pred_check
      _
    $region19: #{_encode_sequence_padded.1} parent=1 // pred_check_branch
      %61 = sbr.rel (0) target = $region21
    $region20: #{_encode_sequence_padded.1} parent=1 // pred_region
      %63 = dma.done [#allocation6], 16
    $region21: #{_encode_sequence_padded.1} parent=1 // pred_fallthru
      _
    // Predicated region
    $region22: #{_encode_sequence_padded.1} parent=1 // pred_check
      _
    $region23: #{_encode_sequence_padded.1} parent=1 // pred_check_branch
      %65 = sbr.rel (0) target = $region25
    $region24: #{_encode_sequence_padded.1} parent=1 // pred_region
      %67 = dma.done [#allocation9], 768
    $region25: #{_encode_sequence_padded.1} parent=1 // pred_fallthru
      _
    // Predicated region
    $region26: #{_encode_sequence_padded.1} parent=1 // pred_check
      _
    $region27: #{_encode_sequence_padded.1} parent=1 // pred_check_branch
      %69 = sbr.rel (0) target = $region29
    $region28: #{_encode_sequence_padded.1} parent=1 // pred_region
      %71 = dma.done [#allocation9], 6144
    $region29: #{_encode_sequence_padded.1} parent=1 // pred_fallthru
      _
    %p72 = scmp.eq.s32.totalorder 0, 0
    // Predicated region
    $region30: #{_encode_sequence_padded.1} parent=1 // pred_check
      %p73 = pneg %p72
    $region31: #{_encode_sequence_padded.1} parent=1 // pred_check_branch
      %75 = sbr.rel (%p73) target = $region33
    $region32: #{_encode_sequence_padded.1} parent=1 // pred_region
      %v76 = vld [vmem:[#allocation5] sm:$0x1]
      %77 = vst [vmem:[#allocation2] sm:$0x1] %v76
    $region33: #{_encode_sequence_padded.1} parent=1 // pred_fallthru
      _
    %s78 = smul.u32 0, 8
    %v79 = vlaneseq
    %v80 = vand.u32 %v79, 127
    %v81 = vlaneseq
    %v82 = vshrl.u32 %v81, 7
    %vm83 = vcmp.eq.s32.totalorder %v82, 0
    %s84 = sld [smem:[#allocation4 + %s78]]
    %v85 = vstv %s84
    %vm86 = vcmp.eq.s32.totalorder %v80, %v85
    %vm87 = vmand %vm83, %vm86
    %v88 = vsel %vm87, 1.0, 0.0
    %vm89 = vcmp.eq.s32.totalorder %v82, 1
    %s90 = sadd.s32 %s78, 1
    %s91 = sld [smem:[#allocation4 + %s90]]
    %v92 = vstv %s91
    %vm93 = vcmp.eq.s32.totalorder %v80, %v92
    %vm94 = vmand %vm89, %vm93
    %v95 = vsel %vm94, 1.0, %v88
    %vm96 = vcmp.eq.s32.totalorder %v82, 2
    %s97 = sadd.s32 %s78, 2
    %s98 = sld [smem:[#allocation4 + %s97]]
    %v99 = vstv %s98
    %vm100 = vcmp.eq.s32.totalorder %v80, %v99
    %vm101 = vmand %vm96, %vm100
    %v102 = vsel %vm101, 1.0, %v95
    %vm103 = vcmp.eq.s32.totalorder %v82, 3
    %s104 = sadd.s32 %s78, 3
    %s105 = sld [smem:[#allocation4 + %s104]]
    %v106 = vstv %s105
    %vm107 = vcmp.eq.s32.totalorder %v80, %v106
    %vm108 = vmand %vm103, %vm107
    %v109 = vsel %vm108, 1.0, %v102
    %vm110 = vcmp.eq.s32.totalorder %v82, 4
    %s111 = sadd.s32 %s78, 4
    %s112 = sld [smem:[#allocation4 + %s111]]
    %v113 = vstv %s112
    %vm114 = vcmp.eq.s32.totalorder %v80, %v113
    %vm115 = vmand %vm110, %vm114
    %v116 = vsel %vm115, 1.0, %v109
    %vm117 = vcmp.eq.s32.totalorder %v82, 5
    %s118 = sadd.s32 %s78, 5
    %s119 = sld [smem:[#allocation4 + %s118]]
    %v120 = vstv %s119
    %vm121 = vcmp.eq.s32.totalorder %v80, %v120
    %vm122 = vmand %vm117, %vm121
    %v123 = vsel %vm122, 1.0, %v116
    %vm124 = vcmp.eq.s32.totalorder %v82, 6
    %s125 = sadd.s32 %s78, 6
    %s126 = sld [smem:[#allocation4 + %s125]]
    %v127 = vstv %s126
    %vm128 = vcmp.eq.s32.totalorder %v80, %v127
    %vm129 = vmand %vm124, %vm128
    %v130 = vsel %vm129, 1.0, %v123
    %vm131 = vcmp.eq.s32.totalorder %v82, 7
    %s132 = sadd.s32 %s78, 7
    %s133 = sld [smem:[#allocation4 + %s132]]
    %v134 = vstv %s133
    %vm135 = vcmp.eq.s32.totalorder %v80, %v134
    %vm136 = vmand %vm131, %vm135
    %v137 = vsel %vm136, 1.0, %v130
    %v138 = vld [vmem:[#allocation8] sm:$0xff]
    %v139 = vld [vmem:[#allocation8 + $0x8] sm:$0xff]
    %v140 = vld [vmem:[#allocation8 + $0x10] sm:$0xff]
    %v141 = vld [vmem:[#allocation8 + $0x18] sm:$0xff]
    %v142 = vld [vmem:[#allocation8 + $0x20] sm:$0xff]
    %v143 = vld [vmem:[#allocation8 + $0x28] sm:$0xff]
    %vm144 = vcmask 130048
    %v146 = vsel %vm144, %v137, 0
    %148 = vmatpush.msra.mxu0 0.0
    %149 = vmatpush.msra.mxu0 0.0
    %150 = vmatpush.msra.mxu0 0.0
    %151 = vmatpush.msra.mxu0 0.0
    %152 = vmatpush.msra.mxu0 0.0
    %153 = vmatpush.msra.mxu0 0.0
    %154 = vmatpush.msra.mxu0 0.0
    %155 = vmatpush.msra.mxu0 0.0
    %156 = vmatpush.msra.mxu0 0.0
    %157 = vmatpush.msra.mxu0 0.0
    %158 = vmatpush.msra.mxu0 0.0
    %159 = vmatpush.msra.mxu0 0.0
    %160 = vmatpush.msra.mxu0 0.0
    %161 = vmatpush.msra.mxu0 0.0
    %162 = vmatpush.msra.mxu0 %v141
    %163 = vmatpush.msra.mxu0 %v138
    %164 = vmatmul.f32.gmra.mxu0 %v146
    %v165 = vpop.f32.mrf.mxu0
    %v166 = vadd.f32 0.0, %v165
    %167 = vdwg.mxu0
    %168 = vmatpush.msra.mxu0 0.0
    %169 = vmatpush.msra.mxu0 0.0
    %170 = vmatpush.msra.mxu0 0.0
    %171 = vmatpush.msra.mxu0 0.0
    %172 = vmatpush.msra.mxu0 0.0
    %173 = vmatpush.msra.mxu0 0.0
    %174 = vmatpush.msra.mxu0 0.0
    %175 = vmatpush.msra.mxu0 0.0
    %176 = vmatpush.msra.mxu0 0.0
    %177 = vmatpush.msra.mxu0 0.0
    %178 = vmatpush.msra.mxu0 0.0
    %179 = vmatpush.msra.mxu0 0.0
    %180 = vmatpush.msra.mxu0 0.0
    %181 = vmatpush.msra.mxu0 0.0
    %182 = vmatpush.msra.mxu0 %v142
    %183 = vmatpush.msra.mxu0 %v139
    %184 = vmatmul.f32.gmra.mxu0 %v146
    %v185 = vpop.f32.mrf.mxu0
    %v186 = vadd.f32 0.0, %v185
    %187 = vdwg.mxu0
    %188 = vmatpush.msra.mxu0 0.0
    %189 = vmatpush.msra.mxu0 0.0
    %190 = vmatpush.msra.mxu0 0.0
    %191 = vmatpush.msra.mxu0 0.0
    %192 = vmatpush.msra.mxu0 0.0
    %193 = vmatpush.msra.mxu0 0.0
    %194 = vmatpush.msra.mxu0 0.0
    %195 = vmatpush.msra.mxu0 0.0
    %196 = vmatpush.msra.mxu0 0.0
    %197 = vmatpush.msra.mxu0 0.0
    %198 = vmatpush.msra.mxu0 0.0
    %199 = vmatpush.msra.mxu0 0.0
    %200 = vmatpush.msra.mxu0 0.0
    %201 = vmatpush.msra.mxu0 0.0
    %202 = vmatpush.msra.mxu0 %v143
    %203 = vmatpush.msra.mxu0 %v140
    %204 = vmatmul.f32.gmra.mxu0 %v146
    %v205 = vpop.f32.mrf.mxu0
    %v206 = vadd.f32 0.0, %v205
    %207 = vdwg.mxu0
    %v208 = vld [vmem:[#allocation10] sm:$0xff]
    %v209 = vld [vmem:[#allocation10 + $0x8] sm:$0xff]
    %v210 = vld [vmem:[#allocation10 + $0x10] sm:$0xff]
    %v211 = vld [vmem:[#allocation10 + $0x18] sm:$0xff]
    %v212 = vld [vmem:[#allocation10 + $0x20] sm:$0xff]
    %v213 = vld [vmem:[#allocation10 + $0x28] sm:$0xff]
    %v214 = vld [vmem:[#allocation10 + $0x30] sm:$0xff]
    %v215 = vld [vmem:[#allocation10 + $0x38] sm:$0xff]
    %v216 = vld [vmem:[#allocation10 + $0x40] sm:$0xff]
    %v217 = vld [vmem:[#allocation10 + $0x48] sm:$0xff]
    %v218 = vld [vmem:[#allocation10 + $0x50] sm:$0xff]
    %v219 = vld [vmem:[#allocation10 + $0x58] sm:$0xff]
    %v220 = vld [vmem:[#allocation10 + $0x60] sm:$0xff]
    %v221 = vld [vmem:[#allocation10 + $0x68] sm:$0xff]
    %v222 = vld [vmem:[#allocation10 + $0x70] sm:$0xff]
    %v223 = vld [vmem:[#allocation10 + $0x78] sm:$0xff]
    %v224 = vld [vmem:[#allocation10 + $0x80] sm:$0xff]
    %v225 = vld [vmem:[#allocation10 + $0x88] sm:$0xff]
    %v226 = vld [vmem:[#allocation10 + $0x90] sm:$0xff]
    %v227 = vld [vmem:[#allocation10 + $0x98] sm:$0xff]
    %v228 = vld [vmem:[#allocation10 + $0xa0] sm:$0xff]
    %v229 = vld [vmem:[#allocation10 + $0xa8] sm:$0xff]
    %v230 = vld [vmem:[#allocation10 + $0xb0] sm:$0xff]
    %v231 = vld [vmem:[#allocation10 + $0xb8] sm:$0xff]
    %v232 = vld [vmem:[#allocation10 + $0xc0] sm:$0xff]
    %v233 = vld [vmem:[#allocation10 + $0xc8] sm:$0xff]
    %v234 = vld [vmem:[#allocation10 + $0xd0] sm:$0xff]
    %v235 = vld [vmem:[#allocation10 + $0xd8] sm:$0xff]
    %v236 = vld [vmem:[#allocation10 + $0xe0] sm:$0xff]
    %v237 = vld [vmem:[#allocation10 + $0xe8] sm:$0xff]
    %v238 = vld [vmem:[#allocation10 + $0xf0] sm:$0xff]
    %v239 = vld [vmem:[#allocation10 + $0xf8] sm:$0xff]
    %v240 = vld [vmem:[#allocation10 + $0x100] sm:$0xff]
    %v241 = vld [vmem:[#allocation10 + $0x108] sm:$0xff]
    %v242 = vld [vmem:[#allocation10 + $0x110] sm:$0xff]
    %v243 = vld [vmem:[#allocation10 + $0x118] sm:$0xff]
    %v244 = vld [vmem:[#allocation10 + $0x120] sm:$0xff]
    %v245 = vld [vmem:[#allocation10 + $0x128] sm:$0xff]
    %v246 = vld [vmem:[#allocation10 + $0x130] sm:$0xff]
    %v247 = vld [vmem:[#allocation10 + $0x138] sm:$0xff]
    %v248 = vld [vmem:[#allocation10 + $0x140] sm:$0xff]
    %v249 = vld [vmem:[#allocation10 + $0x148] sm:$0xff]
    %v250 = vld [vmem:[#allocation10 + $0x150] sm:$0xff]
    %v251 = vld [vmem:[#allocation10 + $0x158] sm:$0xff]
    %v252 = vld [vmem:[#allocation10 + $0x160] sm:$0xff]
    %v253 = vld [vmem:[#allocation10 + $0x168] sm:$0xff]
    %v254 = vld [vmem:[#allocation10 + $0x170] sm:$0xff]
    %v255 = vld [vmem:[#allocation10 + $0x178] sm:$0xff]
    %v256 = vld [vmem:[%s4] sm:$0x1]
    %v257 = vld [vmem:[#allocation2] sm:$0x1]
    %258 = vmatpush.msra.mxu0 %v253
    %259 = vmatpush.msra.mxu0 %v250
    %260 = vmatpush.msra.mxu0 %v247
    %261 = vmatpush.msra.mxu0 %v244
    %262 = vmatpush.msra.mxu0 %v241
    %263 = vmatpush.msra.mxu0 %v238
    %264 = vmatpush.msra.mxu0 %v235
    %265 = vmatpush.msra.mxu0 %v232
    %266 = vmatpush.msra.mxu0 %v229
    %267 = vmatpush.msra.mxu0 %v226
    %268 = vmatpush.msra.mxu0 %v223
    %269 = vmatpush.msra.mxu0 %v220
    %270 = vmatpush.msra.mxu0 %v217
    %271 = vmatpush.msra.mxu0 %v214
    %272 = vmatpush.msra.mxu0 %v211
    %273 = vmatpush.msra.mxu0 %v208
    %274 = vmatmul.f32.gmra.mxu0 %v257
    %v275 = vpop.f32.mrf.mxu0
    %v276 = vadd.f32 0.0, %v275
    %277 = vdwg.mxu0
    %278 = vmatpush.msra.mxu0 %v254
    %279 = vmatpush.msra.mxu0 %v251
    %280 = vmatpush.msra.mxu0 %v248
    %281 = vmatpush.msra.mxu0 %v245
    %282 = vmatpush.msra.mxu0 %v242
    %283 = vmatpush.msra.mxu0 %v239
    %284 = vmatpush.msra.mxu0 %v236
    %285 = vmatpush.msra.mxu0 %v233
    %286 = vmatpush.msra.mxu0 %v230
    %287 = vmatpush.msra.mxu0 %v227
    %288 = vmatpush.msra.mxu0 %v224
    %289 = vmatpush.msra.mxu0 %v221
    %290 = vmatpush.msra.mxu0 %v218
    %291 = vmatpush.msra.mxu0 %v215
    %292 = vmatpush.msra.mxu0 %v212
    %293 = vmatpush.msra.mxu0 %v209
    %294 = vmatmul.f32.gmra.mxu0 %v257
    %v295 = vpop.f32.mrf.mxu0
    %v296 = vadd.f32 0.0, %v295
    %297 = vdwg.mxu0
    %298 = vmatpush.msra.mxu0 %v255
    %299 = vmatpush.msra.mxu0 %v252
    %300 = vmatpush.msra.mxu0 %v249
    %301 = vmatpush.msra.mxu0 %v246
    %302 = vmatpush.msra.mxu0 %v243
    %303 = vmatpush.msra.mxu0 %v240
    %304 = vmatpush.msra.mxu0 %v237
    %305 = vmatpush.msra.mxu0 %v234
    %306 = vmatpush.msra.mxu0 %v231
    %307 = vmatpush.msra.mxu0 %v228
    %308 = vmatpush.msra.mxu0 %v225
    %309 = vmatpush.msra.mxu0 %v222
    %310 = vmatpush.msra.mxu0 %v219
    %311 = vmatpush.msra.mxu0 %v216
    %312 = vmatpush.msra.mxu0 %v213
    %313 = vmatpush.msra.mxu0 %v210
    %314 = vmatmul.f32.gmra.mxu0 %v257
    %v315 = vpop.f32.mrf.mxu0
    %v316 = vadd.f32 0.0, %v315
    %317 = vdwg.mxu0
    %v318 = vadd.f32 %v166, %v276
    %v319 = vxor.u32 %v318, 2147483648
    %v320 = vmul.f32 %v319, 1.442695
    %v321 = vpow.pop %v320
    %v322 = vadd.f32 %v321, 1.0
    %v323 = vrcp.pop %v322
    %v324 = vmul.f32 %v322, %v323
    %v325 = vsub.f32 1.0, %v324
    %v326 = vmul.f32 %v323, %v325
    %v327 = vadd.f32 %v323, %v326
    %vm328 = vweird.f32 %v322
    %vm329 = vweird.f32 %v323
    %vm330 = vmor %vm328, %vm329
    %v331 = vsel %vm330, %v323, %v327
    %v332 = vand.u32 2147483647, %v322
    %vm333 = vcmp.eq.f32.partialorder %v332, 8.507059e+37
    %v334 = vand.u32 %v322, 2147483648
    %v335 = vor.u32 1.1754944e-38, %v334
    %v336 = vsel %vm333, %v335, %v331
    %v337 = vmul.f32 1.0, %v336
    %v338 = vadd.f32 %v186, %v296
    %v339 = vxor.u32 %v338, 2147483648
    %v340 = vmul.f32 %v339, 1.442695
    %v341 = vpow.pop %v340
    %v342 = vadd.f32 %v341, 1.0
    %v343 = vrcp.pop %v342
    %v344 = vmul.f32 %v342, %v343
    %v345 = vsub.f32 1.0, %v344
    %v346 = vmul.f32 %v343, %v345
    %v347 = vadd.f32 %v343, %v346
    %vm348 = vweird.f32 %v342
    %vm349 = vweird.f32 %v343
    %vm350 = vmor %vm348, %vm349
    %v351 = vsel %vm350, %v343, %v347
    %v352 = vand.u32 2147483647, %v342
    %vm353 = vcmp.eq.f32.partialorder %v352, 8.507059e+37
    %v354 = vand.u32 %v342, 2147483648
    %v355 = vor.u32 1.1754944e-38, %v354
    %v356 = vsel %vm353, %v355, %v351
    %v357 = vmul.f32 1.0, %v356
    %v358 = vadd.f32 %v316, %v256
    %v359 = vmul.f32 %v337, %v358
    %v360 = vadd.f32 %v206, %v359
    %v361 = vtanh.pop %v360
    %v362 = vsub.f32 1.0, %v357
    %v363 = vmul.f32 %v362, %v361
    %v364 = vmul.f32 %v357, %v257
    %v365 = vadd.f32 %v363, %v364
    %366 = vst [vmem:[#allocation11] sm:$0x1] %v365
    %367 = vmatpush.msra.mxu0 %v253
    %368 = vmatpush.msra.mxu0 %v250
    %369 = vmatpush.msra.mxu0 %v247
    %370 = vmatpush.msra.mxu0 %v244
    %371 = vmatpush.msra.mxu0 %v241
    %372 = vmatpush.msra.mxu0 %v238
    %373 = vmatpush.msra.mxu0 %v235
    %374 = vmatpush.msra.mxu0 %v232
    %375 = vmatpush.msra.mxu0 %v229
    %376 = vmatpush.msra.mxu0 %v226
    %377 = vmatpush.msra.mxu0 %v223
    %378 = vmatpush.msra.mxu0 %v220
    %379 = vmatpush.msra.mxu0 %v217
    %380 = vmatpush.msra.mxu0 %v214
    %381 = vmatpush.msra.mxu0 %v211
    %382 = vmatpush.msra.mxu0 %v208
    %383 = vmatmul.f32.gmra.mxu0 %v365
    %v384 = vpop.f32.mrf.mxu0
    %v385 = vadd.f32 0.0, %v384
    %386 = vdwg.mxu0
    %387 = vmatpush.msra.mxu0 %v254
    %388 = vmatpush.msra.mxu0 %v251
    %389 = vmatpush.msra.mxu0 %v248
    %390 = vmatpush.msra.mxu0 %v245
    %391 = vmatpush.msra.mxu0 %v242
    %392 = vmatpush.msra.mxu0 %v239
    %393 = vmatpush.msra.mxu0 %v236
    %394 = vmatpush.msra.mxu0 %v233
    %395 = vmatpush.msra.mxu0 %v230
    %396 = vmatpush.msra.mxu0 %v227
    %397 = vmatpush.msra.mxu0 %v224
    %398 = vmatpush.msra.mxu0 %v221
    %399 = vmatpush.msra.mxu0 %v218
    %400 = vmatpush.msra.mxu0 %v215
    %401 = vmatpush.msra.mxu0 %v212
    %402 = vmatpush.msra.mxu0 %v209
    %403 = vmatmul.f32.gmra.mxu0 %v365
    %v404 = vpop.f32.mrf.mxu0
    %v405 = vadd.f32 0.0, %v404
    %406 = vdwg.mxu0
    %407 = vmatpush.msra.mxu0 %v255
    %408 = vmatpush.msra.mxu0 %v252
    %409 = vmatpush.msra.mxu0 %v249
    %410 = vmatpush.msra.mxu0 %v246
    %411 = vmatpush.msra.mxu0 %v243
    %412 = vmatpush.msra.mxu0 %v240
    %413 = vmatpush.msra.mxu0 %v237
    %414 = vmatpush.msra.mxu0 %v234
    %415 = vmatpush.msra.mxu0 %v231
    %416 = vmatpush.msra.mxu0 %v228
    %417 = vmatpush.msra.mxu0 %v225
    %418 = vmatpush.msra.mxu0 %v222
    %419 = vmatpush.msra.mxu0 %v219
    %420 = vmatpush.msra.mxu0 %v216
    %421 = vmatpush.msra.mxu0 %v213
    %422 = vmatpush.msra.mxu0 %v210
    %423 = vmatmul.f32.gmra.mxu0 %v365
    %v424 = vpop.f32.mrf.mxu0
    %v425 = vadd.f32 0.0, %v424
    %426 = vdwg.mxu0
    %v428 = vrot.slane %v385, 7
    %v430 = vadd.f32 %v166, %v428
    %v431 = vxor.u32 %v430, 2147483648
    %v432 = vmul.f32 %v431, 1.442695
    %v433 = vpow.pop %v432
    %v434 = vadd.f32 %v433, 1.0
    %v435 = vrcp.pop %v434
    %v436 = vmul.f32 %v434, %v435
    %v437 = vsub.f32 1.0, %v436
    %v438 = vmul.f32 %v435, %v437
    %v439 = vadd.f32 %v435, %v438
    %vm440 = vweird.f32 %v434
    %vm441 = vweird.f32 %v435
    %vm442 = vmor %vm440, %vm441
    %v443 = vsel %vm442, %v435, %v439
    %v444 = vand.u32 2147483647, %v434
    %vm445 = vcmp.eq.f32.partialorder %v444, 8.507059e+37
    %v446 = vand.u32 %v434, 2147483648
    %v447 = vor.u32 1.1754944e-38, %v446
    %v448 = vsel %vm445, %v447, %v443
    %v449 = vmul.f32 1.0, %v448
    %v451 = vrot.slane %v405, 7
    %v453 = vadd.f32 %v186, %v451
    %v454 = vxor.u32 %v453, 2147483648
    %v455 = vmul.f32 %v454, 1.442695
    %v456 = vpow.pop %v455
    %v457 = vadd.f32 %v456, 1.0
    %v458 = vrcp.pop %v457
    %v459 = vmul.f32 %v457, %v458
    %v460 = vsub.f32 1.0, %v459
    %v461 = vmul.f32 %v458, %v460
    %v462 = vadd.f32 %v458, %v461
    %vm463 = vweird.f32 %v457
    %vm464 = vweird.f32 %v458
    %vm465 = vmor %vm463, %vm464
    %v466 = vsel %vm465, %v458, %v462
    %v467 = vand.u32 2147483647, %v457
    %vm468 = vcmp.eq.f32.partialorder %v467, 8.507059e+37
    %v469 = vand.u32 %v457, 2147483648
    %v470 = vor.u32 1.1754944e-38, %v469
    %v471 = vsel %vm468, %v470, %v466
    %v472 = vmul.f32 1.0, %v471
    %v473 = vadd.f32 %v425, %v256
    %v475 = vrot.slane %v473, 7
    %v477 = vmul.f32 %v449, %v475
    %v478 = vadd.f32 %v206, %v477
    %v479 = vtanh.pop %v478
    %v480 = vsub.f32 1.0, %v472
    %v481 = vmul.f32 %v480, %v479
    %v483 = vrot.slane %v365, 7
    %v485 = vmul.f32 %v472, %v483
    %v486 = vadd.f32 %v481, %v485
    %487 = vst [vmem:[#allocation11] sm:$0x2] %v486
    %v489 = vrot.slane %v486, 1
    %491 = vmatpush.msra.mxu0 %v253
    %492 = vmatpush.msra.mxu0 %v250
    %493 = vmatpush.msra.mxu0 %v247
    %494 = vmatpush.msra.mxu0 %v244
    %495 = vmatpush.msra.mxu0 %v241
    %496 = vmatpush.msra.mxu0 %v238
    %497 = vmatpush.msra.mxu0 %v235
    %498 = vmatpush.msra.mxu0 %v232
    %499 = vmatpush.msra.mxu0 %v229
    %500 = vmatpush.msra.mxu0 %v226
    %501 = vmatpush.msra.mxu0 %v223
    %502 = vmatpush.msra.mxu0 %v220
    %503 = vmatpush.msra.mxu0 %v217
    %504 = vmatpush.msra.mxu0 %v214
    %505 = vmatpush.msra.mxu0 %v211
    %506 = vmatpush.msra.mxu0 %v208
    %507 = vmatmul.f32.gmra.mxu0 %v489
    %v508 = vpop.f32.mrf.mxu0
    %v509 = vadd.f32 0.0, %v508
    %510 = vdwg.mxu0
    %511 = vmatpush.msra.mxu0 %v254
    %512 = vmatpush.msra.mxu0 %v251
    %513 = vmatpush.msra.mxu0 %v248
    %514 = vmatpush.msra.mxu0 %v245
    %515 = vmatpush.msra.mxu0 %v242
    %516 = vmatpush.msra.mxu0 %v239
    %517 = vmatpush.msra.mxu0 %v236
    %518 = vmatpush.msra.mxu0 %v233
    %519 = vmatpush.msra.mxu0 %v230
    %520 = vmatpush.msra.mxu0 %v227
    %521 = vmatpush.msra.mxu0 %v224
    %522 = vmatpush.msra.mxu0 %v221
    %523 = vmatpush.msra.mxu0 %v218
    %524 = vmatpush.msra.mxu0 %v215
    %525 = vmatpush.msra.mxu0 %v212
    %526 = vmatpush.msra.mxu0 %v209
    %527 = vmatmul.f32.gmra.mxu0 %v489
    %v528 = vpop.f32.mrf.mxu0
    %v529 = vadd.f32 0.0, %v528
    %530 = vdwg.mxu0
    %531 = vmatpush.msra.mxu0 %v255
    %532 = vmatpush.msra.mxu0 %v252
    %533 = vmatpush.msra.mxu0 %v249
    %534 = vmatpush.msra.mxu0 %v246
    %535 = vmatpush.msra.mxu0 %v243
    %536 = vmatpush.msra.mxu0 %v240
    %537 = vmatpush.msra.mxu0 %v237
    %538 = vmatpush.msra.mxu0 %v234
    %539 = vmatpush.msra.mxu0 %v231
    %540 = vmatpush.msra.mxu0 %v228
    %541 = vmatpush.msra.mxu0 %v225
    %542 = vmatpush.msra.mxu0 %v222
    %543 = vmatpush.msra.mxu0 %v219
    %544 = vmatpush.msra.mxu0 %v216
    %545 = vmatpush.msra.mxu0 %v213
    %546 = vmatpush.msra.mxu0 %v210
    %547 = vmatmul.f32.gmra.mxu0 %v489
    %v548 = vpop.f32.mrf.mxu0
    %v549 = vadd.f32 0.0, %v548
    %550 = vdwg.mxu0
    %v552 = vrot.slane %v509, 6
    %v554 = vadd.f32 %v166, %v552
    %v555 = vxor.u32 %v554, 2147483648
    %v556 = vmul.f32 %v555, 1.442695
    %v557 = vpow.pop %v556
    %v558 = vadd.f32 %v557, 1.0
    %v559 = vrcp.pop %v558
    %v560 = vmul.f32 %v558, %v559
    %v561 = vsub.f32 1.0, %v560
    %v562 = vmul.f32 %v559, %v561
    %v563 = vadd.f32 %v559, %v562
    %vm564 = vweird.f32 %v558
    %vm565 = vweird.f32 %v559
    %vm566 = vmor %vm564, %vm565
    %v567 = vsel %vm566, %v559, %v563
    %v568 = vand.u32 2147483647, %v558
    %vm569 = vcmp.eq.f32.partialorder %v568, 8.507059e+37
    %v570 = vand.u32 %v558, 2147483648
    %v571 = vor.u32 1.1754944e-38, %v570
    %v572 = vsel %vm569, %v571, %v567
    %v573 = vmul.f32 1.0, %v572
    %v575 = vrot.slane %v529, 6
    %v577 = vadd.f32 %v186, %v575
    %v578 = vxor.u32 %v577, 2147483648
    %v579 = vmul.f32 %v578, 1.442695
    %v580 = vpow.pop %v579
    %v581 = vadd.f32 %v580, 1.0
    %v582 = vrcp.pop %v581
    %v583 = vmul.f32 %v581, %v582
    %v584 = vsub.f32 1.0, %v583
    %v585 = vmul.f32 %v582, %v584
    %v586 = vadd.f32 %v582, %v585
    %vm587 = vweird.f32 %v581
    %vm588 = vweird.f32 %v582
    %vm589 = vmor %vm587, %vm588
    %v590 = vsel %vm589, %v582, %v586
    %v591 = vand.u32 2147483647, %v581
    %vm592 = vcmp.eq.f32.partialorder %v591, 8.507059e+37
    %v593 = vand.u32 %v581, 2147483648
    %v594 = vor.u32 1.1754944e-38, %v593
    %v595 = vsel %vm592, %v594, %v590
    %v596 = vmul.f32 1.0, %v595
    %v597 = vadd.f32 %v549, %v256
    %v599 = vrot.slane %v597, 6
    %v601 = vmul.f32 %v573, %v599
    %v602 = vadd.f32 %v206, %v601
    %v603 = vtanh.pop %v602
    %v604 = vsub.f32 1.0, %v596
    %v605 = vmul.f32 %v604, %v603
    %v606 = vrot.slane %v486, 7
    %v608 = vmul.f32 %v596, %v606
    %v609 = vadd.f32 %v605, %v608
    %610 = vst [vmem:[#allocation11] sm:$0x4] %v609
    %v612 = vrot.slane %v609, 2
    %614 = vmatpush.msra.mxu0 %v253
    %615 = vmatpush.msra.mxu0 %v250
    %616 = vmatpush.msra.mxu0 %v247
    %617 = vmatpush.msra.mxu0 %v244
    %618 = vmatpush.msra.mxu0 %v241
    %619 = vmatpush.msra.mxu0 %v238
    %620 = vmatpush.msra.mxu0 %v235
    %621 = vmatpush.msra.mxu0 %v232
    %622 = vmatpush.msra.mxu0 %v229
    %623 = vmatpush.msra.mxu0 %v226
    %624 = vmatpush.msra.mxu0 %v223
    %625 = vmatpush.msra.mxu0 %v220
    %626 = vmatpush.msra.mxu0 %v217
    %627 = vmatpush.msra.mxu0 %v214
    %628 = vmatpush.msra.mxu0 %v211
    %629 = vmatpush.msra.mxu0 %v208
    %630 = vmatmul.f32.gmra.mxu0 %v612
    %v631 = vpop.f32.mrf.mxu0
    %v632 = vadd.f32 0.0, %v631
    %633 = vdwg.mxu0
    %634 = vmatpush.msra.mxu0 %v254
    %635 = vmatpush.msra.mxu0 %v251
    %636 = vmatpush.msra.mxu0 %v248
    %637 = vmatpush.msra.mxu0 %v245
    %638 = vmatpush.msra.mxu0 %v242
    %639 = vmatpush.msra.mxu0 %v239
    %640 = vmatpush.msra.mxu0 %v236
    %641 = vmatpush.msra.mxu0 %v233
    %642 = vmatpush.msra.mxu0 %v230
    %643 = vmatpush.msra.mxu0 %v227
    %644 = vmatpush.msra.mxu0 %v224
    %645 = vmatpush.msra.mxu0 %v221
    %646 = vmatpush.msra.mxu0 %v218
    %647 = vmatpush.msra.mxu0 %v215
    %648 = vmatpush.msra.mxu0 %v212
    %649 = vmatpush.msra.mxu0 %v209
    %650 = vmatmul.f32.gmra.mxu0 %v612
    %v651 = vpop.f32.mrf.mxu0
    %v652 = vadd.f32 0.0, %v651
    %653 = vdwg.mxu0
    %654 = vmatpush.msra.mxu0 %v255
    %655 = vmatpush.msra.mxu0 %v252
    %656 = vmatpush.msra.mxu0 %v249
    %657 = vmatpush.msra.mxu0 %v246
    %658 = vmatpush.msra.mxu0 %v243
    %659 = vmatpush.msra.mxu0 %v240
    %660 = vmatpush.msra.mxu0 %v237
    %661 = vmatpush.msra.mxu0 %v234
    %662 = vmatpush.msra.mxu0 %v231
    %663 = vmatpush.msra.mxu0 %v228
    %664 = vmatpush.msra.mxu0 %v225
    %665 = vmatpush.msra.mxu0 %v222
    %666 = vmatpush.msra.mxu0 %v219
    %667 = vmatpush.msra.mxu0 %v216
    %668 = vmatpush.msra.mxu0 %v213
    %669 = vmatpush.msra.mxu0 %v210
    %670 = vmatmul.f32.gmra.mxu0 %v612
    %v671 = vpop.f32.mrf.mxu0
    %v672 = vadd.f32 0.0, %v671
    %673 = vdwg.mxu0
    %v675 = vrot.slane %v632, 5
    %v677 = vadd.f32 %v166, %v675
    %v678 = vxor.u32 %v677, 2147483648
    %v679 = vmul.f32 %v678, 1.442695
    %v680 = vpow.pop %v679
    %v681 = vadd.f32 %v680, 1.0
    %v682 = vrcp.pop %v681
    %v683 = vmul.f32 %v681, %v682
    %v684 = vsub.f32 1.0, %v683
    %v685 = vmul.f32 %v682, %v684
    %v686 = vadd.f32 %v682, %v685
    %vm687 = vweird.f32 %v681
    %vm688 = vweird.f32 %v682
    %vm689 = vmor %vm687, %vm688
    %v690 = vsel %vm689, %v682, %v686
    %v691 = vand.u32 2147483647, %v681
    %vm692 = vcmp.eq.f32.partialorder %v691, 8.507059e+37
    %v693 = vand.u32 %v681, 2147483648
    %v694 = vor.u32 1.1754944e-38, %v693
    %v695 = vsel %vm692, %v694, %v690
    %v696 = vmul.f32 1.0, %v695
    %v698 = vrot.slane %v652, 5
    %v700 = vadd.f32 %v186, %v698
    %v701 = vxor.u32 %v700, 2147483648
    %v702 = vmul.f32 %v701, 1.442695
    %v703 = vpow.pop %v702
    %v704 = vadd.f32 %v703, 1.0
    %v705 = vrcp.pop %v704
    %v706 = vmul.f32 %v704, %v705
    %v707 = vsub.f32 1.0, %v706
    %v708 = vmul.f32 %v705, %v707
    %v709 = vadd.f32 %v705, %v708
    %vm710 = vweird.f32 %v704
    %vm711 = vweird.f32 %v705
    %vm712 = vmor %vm710, %vm711
    %v713 = vsel %vm712, %v705, %v709
    %v714 = vand.u32 2147483647, %v704
    %vm715 = vcmp.eq.f32.partialorder %v714, 8.507059e+37
    %v716 = vand.u32 %v704, 2147483648
    %v717 = vor.u32 1.1754944e-38, %v716
    %v718 = vsel %vm715, %v717, %v713
    %v719 = vmul.f32 1.0, %v718
    %v720 = vadd.f32 %v672, %v256
    %v722 = vrot.slane %v720, 5
    %v724 = vmul.f32 %v696, %v722
    %v725 = vadd.f32 %v206, %v724
    %v726 = vtanh.pop %v725
    %v727 = vsub.f32 1.0, %v719
    %v728 = vmul.f32 %v727, %v726
    %v729 = vrot.slane %v609, 7
    %v731 = vmul.f32 %v719, %v729
    %v732 = vadd.f32 %v728, %v731
    %733 = vst [vmem:[#allocation11] sm:$0x8] %v732
    %v735 = vrot.slane %v732, 3
    %737 = vmatpush.msra.mxu0 %v253
    %738 = vmatpush.msra.mxu0 %v250
    %739 = vmatpush.msra.mxu0 %v247
    %740 = vmatpush.msra.mxu0 %v244
    %741 = vmatpush.msra.mxu0 %v241
    %742 = vmatpush.msra.mxu0 %v238
    %743 = vmatpush.msra.mxu0 %v235
    %744 = vmatpush.msra.mxu0 %v232
    %745 = vmatpush.msra.mxu0 %v229
    %746 = vmatpush.msra.mxu0 %v226
    %747 = vmatpush.msra.mxu0 %v223
    %748 = vmatpush.msra.mxu0 %v220
    %749 = vmatpush.msra.mxu0 %v217
    %750 = vmatpush.msra.mxu0 %v214
    %751 = vmatpush.msra.mxu0 %v211
    %752 = vmatpush.msra.mxu0 %v208
    %753 = vmatmul.f32.gmra.mxu0 %v735
    %v754 = vpop.f32.mrf.mxu0
    %v755 = vadd.f32 0.0, %v754
    %756 = vdwg.mxu0
    %757 = vmatpush.msra.mxu0 %v254
    %758 = vmatpush.msra.mxu0 %v251
    %759 = vmatpush.msra.mxu0 %v248
    %760 = vmatpush.msra.mxu0 %v245
    %761 = vmatpush.msra.mxu0 %v242
    %762 = vmatpush.msra.mxu0 %v239
    %763 = vmatpush.msra.mxu0 %v236
    %764 = vmatpush.msra.mxu0 %v233
    %765 = vmatpush.msra.mxu0 %v230
    %766 = vmatpush.msra.mxu0 %v227
    %767 = vmatpush.msra.mxu0 %v224
    %768 = vmatpush.msra.mxu0 %v221
    %769 = vmatpush.msra.mxu0 %v218
    %770 = vmatpush.msra.mxu0 %v215
    %771 = vmatpush.msra.mxu0 %v212
    %772 = vmatpush.msra.mxu0 %v209
    %773 = vmatmul.f32.gmra.mxu0 %v735
    %v774 = vpop.f32.mrf.mxu0
    %v775 = vadd.f32 0.0, %v774
    %776 = vdwg.mxu0
    %777 = vmatpush.msra.mxu0 %v255
    %778 = vmatpush.msra.mxu0 %v252
    %779 = vmatpush.msra.mxu0 %v249
    %780 = vmatpush.msra.mxu0 %v246
    %781 = vmatpush.msra.mxu0 %v243
    %782 = vmatpush.msra.mxu0 %v240
    %783 = vmatpush.msra.mxu0 %v237
    %784 = vmatpush.msra.mxu0 %v234
    %785 = vmatpush.msra.mxu0 %v231
    %786 = vmatpush.msra.mxu0 %v228
    %787 = vmatpush.msra.mxu0 %v225
    %788 = vmatpush.msra.mxu0 %v222
    %789 = vmatpush.msra.mxu0 %v219
    %790 = vmatpush.msra.mxu0 %v216
    %791 = vmatpush.msra.mxu0 %v213
    %792 = vmatpush.msra.mxu0 %v210
    %793 = vmatmul.f32.gmra.mxu0 %v735
    %v794 = vpop.f32.mrf.mxu0
    %v795 = vadd.f32 0.0, %v794
    %796 = vdwg.mxu0
    %v798 = vrot.slane %v755, 4
    %v800 = vadd.f32 %v166, %v798
    %v801 = vxor.u32 %v800, 2147483648
    %v802 = vmul.f32 %v801, 1.442695
    %v803 = vpow.pop %v802
    %v804 = vadd.f32 %v803, 1.0
    %v805 = vrcp.pop %v804
    %v806 = vmul.f32 %v804, %v805
    %v807 = vsub.f32 1.0, %v806
    %v808 = vmul.f32 %v805, %v807
    %v809 = vadd.f32 %v805, %v808
    %vm810 = vweird.f32 %v804
    %vm811 = vweird.f32 %v805
    %vm812 = vmor %vm810, %vm811
    %v813 = vsel %vm812, %v805, %v809
    %v814 = vand.u32 2147483647, %v804
    %vm815 = vcmp.eq.f32.partialorder %v814, 8.507059e+37
    %v816 = vand.u32 %v804, 2147483648
    %v817 = vor.u32 1.1754944e-38, %v816
    %v818 = vsel %vm815, %v817, %v813
    %v819 = vmul.f32 1.0, %v818
    %v821 = vrot.slane %v775, 4
    %v823 = vadd.f32 %v186, %v821
    %v824 = vxor.u32 %v823, 2147483648
    %v825 = vmul.f32 %v824, 1.442695
    %v826 = vpow.pop %v825
    %v827 = vadd.f32 %v826, 1.0
    %v828 = vrcp.pop %v827
    %v829 = vmul.f32 %v827, %v828
    %v830 = vsub.f32 1.0, %v829
    %v831 = vmul.f32 %v828, %v830
    %v832 = vadd.f32 %v828, %v831
    %vm833 = vweird.f32 %v827
    %vm834 = vweird.f32 %v828
    %vm835 = vmor %vm833, %vm834
    %v836 = vsel %vm835, %v828, %v832
    %v837 = vand.u32 2147483647, %v827
    %vm838 = vcmp.eq.f32.partialorder %v837, 8.507059e+37
    %v839 = vand.u32 %v827, 2147483648
    %v840 = vor.u32 1.1754944e-38, %v839
    %v841 = vsel %vm838, %v840, %v836
    %v842 = vmul.f32 1.0, %v841
    %v843 = vadd.f32 %v795, %v256
    %v845 = vrot.slane %v843, 4
    %v847 = vmul.f32 %v819, %v845
    %v848 = vadd.f32 %v206, %v847
    %v849 = vtanh.pop %v848
    %v850 = vsub.f32 1.0, %v842
    %v851 = vmul.f32 %v850, %v849
    %v852 = vrot.slane %v732, 7
    %v854 = vmul.f32 %v842, %v852
    %v855 = vadd.f32 %v851, %v854
    %856 = vst [vmem:[#allocation11] sm:$0x10] %v855
    %v858 = vrot.slane %v855, 4
    %860 = vmatpush.msra.mxu0 %v253
    %861 = vmatpush.msra.mxu0 %v250
    %862 = vmatpush.msra.mxu0 %v247
    %863 = vmatpush.msra.mxu0 %v244
    %864 = vmatpush.msra.mxu0 %v241
    %865 = vmatpush.msra.mxu0 %v238
    %866 = vmatpush.msra.mxu0 %v235
    %867 = vmatpush.msra.mxu0 %v232
    %868 = vmatpush.msra.mxu0 %v229
    %869 = vmatpush.msra.mxu0 %v226
    %870 = vmatpush.msra.mxu0 %v223
    %871 = vmatpush.msra.mxu0 %v220
    %872 = vmatpush.msra.mxu0 %v217
    %873 = vmatpush.msra.mxu0 %v214
    %874 = vmatpush.msra.mxu0 %v211
    %875 = vmatpush.msra.mxu0 %v208
    %876 = vmatmul.f32.gmra.mxu0 %v858
    %v877 = vpop.f32.mrf.mxu0
    %v878 = vadd.f32 0.0, %v877
    %879 = vdwg.mxu0
    %880 = vmatpush.msra.mxu0 %v254
    %881 = vmatpush.msra.mxu0 %v251
    %882 = vmatpush.msra.mxu0 %v248
    %883 = vmatpush.msra.mxu0 %v245
    %884 = vmatpush.msra.mxu0 %v242
    %885 = vmatpush.msra.mxu0 %v239
    %886 = vmatpush.msra.mxu0 %v236
    %887 = vmatpush.msra.mxu0 %v233
    %888 = vmatpush.msra.mxu0 %v230
    %889 = vmatpush.msra.mxu0 %v227
    %890 = vmatpush.msra.mxu0 %v224
    %891 = vmatpush.msra.mxu0 %v221
    %892 = vmatpush.msra.mxu0 %v218
    %893 = vmatpush.msra.mxu0 %v215
    %894 = vmatpush.msra.mxu0 %v212
    %895 = vmatpush.msra.mxu0 %v209
    %896 = vmatmul.f32.gmra.mxu0 %v858
    %v897 = vpop.f32.mrf.mxu0
    %v898 = vadd.f32 0.0, %v897
    %899 = vdwg.mxu0
    %900 = vmatpush.msra.mxu0 %v255
    %901 = vmatpush.msra.mxu0 %v252
    %902 = vmatpush.msra.mxu0 %v249
    %903 = vmatpush.msra.mxu0 %v246
    %904 = vmatpush.msra.mxu0 %v243
    %905 = vmatpush.msra.mxu0 %v240
    %906 = vmatpush.msra.mxu0 %v237
    %907 = vmatpush.msra.mxu0 %v234
    %908 = vmatpush.msra.mxu0 %v231
    %909 = vmatpush.msra.mxu0 %v228
    %910 = vmatpush.msra.mxu0 %v225
    %911 = vmatpush.msra.mxu0 %v222
    %912 = vmatpush.msra.mxu0 %v219
    %913 = vmatpush.msra.mxu0 %v216
    %914 = vmatpush.msra.mxu0 %v213
    %915 = vmatpush.msra.mxu0 %v210
    %916 = vmatmul.f32.gmra.mxu0 %v858
    %v917 = vpop.f32.mrf.mxu0
    %v918 = vadd.f32 0.0, %v917
    %919 = vdwg.mxu0
    %v921 = vrot.slane %v878, 3
    %v923 = vadd.f32 %v166, %v921
    %v924 = vxor.u32 %v923, 2147483648
    %v925 = vmul.f32 %v924, 1.442695
    %v926 = vpow.pop %v925
    %v927 = vadd.f32 %v926, 1.0
    %v928 = vrcp.pop %v927
    %v929 = vmul.f32 %v927, %v928
    %v930 = vsub.f32 1.0, %v929
    %v931 = vmul.f32 %v928, %v930
    %v932 = vadd.f32 %v928, %v931
    %vm933 = vweird.f32 %v927
    %vm934 = vweird.f32 %v928
    %vm935 = vmor %vm933, %vm934
    %v936 = vsel %vm935, %v928, %v932
    %v937 = vand.u32 2147483647, %v927
    %vm938 = vcmp.eq.f32.partialorder %v937, 8.507059e+37
    %v939 = vand.u32 %v927, 2147483648
    %v940 = vor.u32 1.1754944e-38, %v939
    %v941 = vsel %vm938, %v940, %v936
    %v942 = vmul.f32 1.0, %v941
    %v944 = vrot.slane %v898, 3
    %v946 = vadd.f32 %v186, %v944
    %v947 = vxor.u32 %v946, 2147483648
    %v948 = vmul.f32 %v947, 1.442695
    %v949 = vpow.pop %v948
    %v950 = vadd.f32 %v949, 1.0
    %v951 = vrcp.pop %v950
    %v952 = vmul.f32 %v950, %v951
    %v953 = vsub.f32 1.0, %v952
    %v954 = vmul.f32 %v951, %v953
    %v955 = vadd.f32 %v951, %v954
    %vm956 = vweird.f32 %v950
    %vm957 = vweird.f32 %v951
    %vm958 = vmor %vm956, %vm957
    %v959 = vsel %vm958, %v951, %v955
    %v960 = vand.u32 2147483647, %v950
    %vm961 = vcmp.eq.f32.partialorder %v960, 8.507059e+37
    %v962 = vand.u32 %v950, 2147483648
    %v963 = vor.u32 1.1754944e-38, %v962
    %v964 = vsel %vm961, %v963, %v959
    %v965 = vmul.f32 1.0, %v964
    %v966 = vadd.f32 %v918, %v256
    %v968 = vrot.slane %v966, 3
    %v970 = vmul.f32 %v942, %v968
    %v971 = vadd.f32 %v206, %v970
    %v972 = vtanh.pop %v971
    %v973 = vsub.f32 1.0, %v965
    %v974 = vmul.f32 %v973, %v972
    %v975 = vrot.slane %v855, 7
    %v977 = vmul.f32 %v965, %v975
    %v978 = vadd.f32 %v974, %v977
    %979 = vst [vmem:[#allocation11] sm:$0x20] %v978
    %v981 = vrot.slane %v978, 5
    %983 = vmatpush.msra.mxu0 %v253
    %984 = vmatpush.msra.mxu0 %v250
    %985 = vmatpush.msra.mxu0 %v247
    %986 = vmatpush.msra.mxu0 %v244
    %987 = vmatpush.msra.mxu0 %v241
    %988 = vmatpush.msra.mxu0 %v238
    %989 = vmatpush.msra.mxu0 %v235
    %990 = vmatpush.msra.mxu0 %v232
    %991 = vmatpush.msra.mxu0 %v229
    %992 = vmatpush.msra.mxu0 %v226
    %993 = vmatpush.msra.mxu0 %v223
    %994 = vmatpush.msra.mxu0 %v220
    %995 = vmatpush.msra.mxu0 %v217
    %996 = vmatpush.msra.mxu0 %v214
    %997 = vmatpush.msra.mxu0 %v211
    %998 = vmatpush.msra.mxu0 %v208
    %999 = vmatmul.f32.gmra.mxu0 %v981
    %v1000 = vpop.f32.mrf.mxu0
    %v1001 = vadd.f32 0.0, %v1000
    %1002 = vdwg.mxu0
    %1003 = vmatpush.msra.mxu0 %v254
    %1004 = vmatpush.msra.mxu0 %v251
    %1005 = vmatpush.msra.mxu0 %v248
    %1006 = vmatpush.msra.mxu0 %v245
    %1007 = vmatpush.msra.mxu0 %v242
    %1008 = vmatpush.msra.mxu0 %v239
    %1009 = vmatpush.msra.mxu0 %v236
    %1010 = vmatpush.msra.mxu0 %v233
    %1011 = vmatpush.msra.mxu0 %v230
    %1012 = vmatpush.msra.mxu0 %v227
    %1013 = vmatpush.msra.mxu0 %v224
    %1014 = vmatpush.msra.mxu0 %v221
    %1015 = vmatpush.msra.mxu0 %v218
    %1016 = vmatpush.msra.mxu0 %v215
    %1017 = vmatpush.msra.mxu0 %v212
    %1018 = vmatpush.msra.mxu0 %v209
    %1019 = vmatmul.f32.gmra.mxu0 %v981
    %v1020 = vpop.f32.mrf.mxu0
    %v1021 = vadd.f32 0.0, %v1020
    %1022 = vdwg.mxu0
    %1023 = vmatpush.msra.mxu0 %v255
    %1024 = vmatpush.msra.mxu0 %v252
    %1025 = vmatpush.msra.mxu0 %v249
    %1026 = vmatpush.msra.mxu0 %v246
    %1027 = vmatpush.msra.mxu0 %v243
    %1028 = vmatpush.msra.mxu0 %v240
    %1029 = vmatpush.msra.mxu0 %v237
    %1030 = vmatpush.msra.mxu0 %v234
    %1031 = vmatpush.msra.mxu0 %v231
    %1032 = vmatpush.msra.mxu0 %v228
    %1033 = vmatpush.msra.mxu0 %v225
    %1034 = vmatpush.msra.mxu0 %v222
    %1035 = vmatpush.msra.mxu0 %v219
    %1036 = vmatpush.msra.mxu0 %v216
    %1037 = vmatpush.msra.mxu0 %v213
    %1038 = vmatpush.msra.mxu0 %v210
    %1039 = vmatmul.f32.gmra.mxu0 %v981
    %v1040 = vpop.f32.mrf.mxu0
    %v1041 = vadd.f32 0.0, %v1040
    %1042 = vdwg.mxu0
    %v1044 = vrot.slane %v1001, 2
    %v1046 = vadd.f32 %v166, %v1044
    %v1047 = vxor.u32 %v1046, 2147483648
    %v1048 = vmul.f32 %v1047, 1.442695
    %v1049 = vpow.pop %v1048
    %v1050 = vadd.f32 %v1049, 1.0
    %v1051 = vrcp.pop %v1050
    %v1052 = vmul.f32 %v1050, %v1051
    %v1053 = vsub.f32 1.0, %v1052
    %v1054 = vmul.f32 %v1051, %v1053
    %v1055 = vadd.f32 %v1051, %v1054
    %vm1056 = vweird.f32 %v1050
    %vm1057 = vweird.f32 %v1051
    %vm1058 = vmor %vm1056, %vm1057
    %v1059 = vsel %vm1058, %v1051, %v1055
    %v1060 = vand.u32 2147483647, %v1050
    %vm1061 = vcmp.eq.f32.partialorder %v1060, 8.507059e+37
    %v1062 = vand.u32 %v1050, 2147483648
    %v1063 = vor.u32 1.1754944e-38, %v1062
    %v1064 = vsel %vm1061, %v1063, %v1059
    %v1065 = vmul.f32 1.0, %v1064
    %v1067 = vrot.slane %v1021, 2
    %v1069 = vadd.f32 %v186, %v1067
    %v1070 = vxor.u32 %v1069, 2147483648
    %v1071 = vmul.f32 %v1070, 1.442695
    %v1072 = vpow.pop %v1071
    %v1073 = vadd.f32 %v1072, 1.0
    %v1074 = vrcp.pop %v1073
    %v1075 = vmul.f32 %v1073, %v1074
    %v1076 = vsub.f32 1.0, %v1075
    %v1077 = vmul.f32 %v1074, %v1076
    %v1078 = vadd.f32 %v1074, %v1077
    %vm1079 = vweird.f32 %v1073
    %vm1080 = vweird.f32 %v1074
    %vm1081 = vmor %vm1079, %vm1080
    %v1082 = vsel %vm1081, %v1074, %v1078
    %v1083 = vand.u32 2147483647, %v1073
    %vm1084 = vcmp.eq.f32.partialorder %v1083, 8.507059e+37
    %v1085 = vand.u32 %v1073, 2147483648
    %v1086 = vor.u32 1.1754944e-38, %v1085
    %v1087 = vsel %vm1084, %v1086, %v1082
    %v1088 = vmul.f32 1.0, %v1087
    %v1089 = vadd.f32 %v1041, %v256
    %v1091 = vrot.slane %v1089, 2
    %v1093 = vmul.f32 %v1065, %v1091
    %v1094 = vadd.f32 %v206, %v1093
    %v1095 = vtanh.pop %v1094
    %v1096 = vsub.f32 1.0, %v1088
    %v1097 = vmul.f32 %v1096, %v1095
    %v1098 = vrot.slane %v978, 7
    %v1100 = vmul.f32 %v1088, %v1098
    %v1101 = vadd.f32 %v1097, %v1100
    %1102 = vst [vmem:[#allocation11] sm:$0x40] %v1101
    %v1104 = vrot.slane %v1101, 6
    %1106 = vmatpush.msra.mxu0 %v253
    %1107 = vmatpush.msra.mxu0 %v250
    %1108 = vmatpush.msra.mxu0 %v247
    %1109 = vmatpush.msra.mxu0 %v244
    %1110 = vmatpush.msra.mxu0 %v241
    %1111 = vmatpush.msra.mxu0 %v238
    %1112 = vmatpush.msra.mxu0 %v235
    %1113 = vmatpush.msra.mxu0 %v232
    %1114 = vmatpush.msra.mxu0 %v229
    %1115 = vmatpush.msra.mxu0 %v226
    %1116 = vmatpush.msra.mxu0 %v223
    %1117 = vmatpush.msra.mxu0 %v220
    %1118 = vmatpush.msra.mxu0 %v217
    %1119 = vmatpush.msra.mxu0 %v214
    %1120 = vmatpush.msra.mxu0 %v211
    %1121 = vmatpush.msra.mxu0 %v208
    %1122 = vmatmul.f32.gmra.mxu0 %v1104
    %v1123 = vpop.f32.mrf.mxu0
    %v1124 = vadd.f32 0.0, %v1123
    %1125 = vdwg.mxu0
    %1126 = vmatpush.msra.mxu0 %v254
    %1127 = vmatpush.msra.mxu0 %v251
    %1128 = vmatpush.msra.mxu0 %v248
    %1129 = vmatpush.msra.mxu0 %v245
    %1130 = vmatpush.msra.mxu0 %v242
    %1131 = vmatpush.msra.mxu0 %v239
    %1132 = vmatpush.msra.mxu0 %v236
    %1133 = vmatpush.msra.mxu0 %v233
    %1134 = vmatpush.msra.mxu0 %v230
    %1135 = vmatpush.msra.mxu0 %v227
    %1136 = vmatpush.msra.mxu0 %v224
    %1137 = vmatpush.msra.mxu0 %v221
    %1138 = vmatpush.msra.mxu0 %v218
    %1139 = vmatpush.msra.mxu0 %v215
    %1140 = vmatpush.msra.mxu0 %v212
    %1141 = vmatpush.msra.mxu0 %v209
    %1142 = vmatmul.f32.gmra.mxu0 %v1104
    %v1143 = vpop.f32.mrf.mxu0
    %v1144 = vadd.f32 0.0, %v1143
    %1145 = vdwg.mxu0
    %1146 = vmatpush.msra.mxu0 %v255
    %1147 = vmatpush.msra.mxu0 %v252
    %1148 = vmatpush.msra.mxu0 %v249
    %1149 = vmatpush.msra.mxu0 %v246
    %1150 = vmatpush.msra.mxu0 %v243
    %1151 = vmatpush.msra.mxu0 %v240
    %1152 = vmatpush.msra.mxu0 %v237
    %1153 = vmatpush.msra.mxu0 %v234
    %1154 = vmatpush.msra.mxu0 %v231
    %1155 = vmatpush.msra.mxu0 %v228
    %1156 = vmatpush.msra.mxu0 %v225
    %1157 = vmatpush.msra.mxu0 %v222
    %1158 = vmatpush.msra.mxu0 %v219
    %1159 = vmatpush.msra.mxu0 %v216
    %1160 = vmatpush.msra.mxu0 %v213
    %1161 = vmatpush.msra.mxu0 %v210
    %1162 = vmatmul.f32.gmra.mxu0 %v1104
    %v1163 = vpop.f32.mrf.mxu0
    %v1164 = vadd.f32 0.0, %v1163
    %1165 = vdwg.mxu0
    %v1167 = vrot.slane %v1124, 1
    %v1169 = vadd.f32 %v166, %v1167
    %v1170 = vxor.u32 %v1169, 2147483648
    %v1171 = vmul.f32 %v1170, 1.442695
    %v1172 = vpow.pop %v1171
    %v1173 = vadd.f32 %v1172, 1.0
    %v1174 = vrcp.pop %v1173
    %v1175 = vmul.f32 %v1173, %v1174
    %v1176 = vsub.f32 1.0, %v1175
    %v1177 = vmul.f32 %v1174, %v1176
    %v1178 = vadd.f32 %v1174, %v1177
    %vm1179 = vweird.f32 %v1173
    %vm1180 = vweird.f32 %v1174
    %vm1181 = vmor %vm1179, %vm1180
    %v1182 = vsel %vm1181, %v1174, %v1178
    %v1183 = vand.u32 2147483647, %v1173
    %vm1184 = vcmp.eq.f32.partialorder %v1183, 8.507059e+37
    %v1185 = vand.u32 %v1173, 2147483648
    %v1186 = vor.u32 1.1754944e-38, %v1185
    %v1187 = vsel %vm1184, %v1186, %v1182
    %v1188 = vmul.f32 1.0, %v1187
    %v1190 = vrot.slane %v1144, 1
    %v1192 = vadd.f32 %v186, %v1190
    %v1193 = vxor.u32 %v1192, 2147483648
    %v1194 = vmul.f32 %v1193, 1.442695
    %v1195 = vpow.pop %v1194
    %v1196 = vadd.f32 %v1195, 1.0
    %v1197 = vrcp.pop %v1196
    %v1198 = vmul.f32 %v1196, %v1197
    %v1199 = vsub.f32 1.0, %v1198
    %v1200 = vmul.f32 %v1197, %v1199
    %v1201 = vadd.f32 %v1197, %v1200
    %vm1202 = vweird.f32 %v1196
    %vm1203 = vweird.f32 %v1197
    %vm1204 = vmor %vm1202, %vm1203
    %v1205 = vsel %vm1204, %v1197, %v1201
    %v1206 = vand.u32 2147483647, %v1196
    %vm1207 = vcmp.eq.f32.partialorder %v1206, 8.507059e+37
    %v1208 = vand.u32 %v1196, 2147483648
    %v1209 = vor.u32 1.1754944e-38, %v1208
    %v1210 = vsel %vm1207, %v1209, %v1205
    %v1211 = vmul.f32 1.0, %v1210
    %v1212 = vadd.f32 %v1164, %v256
    %v1214 = vrot.slane %v1212, 1
    %v1216 = vmul.f32 %v1188, %v1214
    %v1217 = vadd.f32 %v206, %v1216
    %v1218 = vtanh.pop %v1217
    %v1219 = vsub.f32 1.0, %v1211
    %v1220 = vmul.f32 %v1219, %v1218
    %v1221 = vrot.slane %v1101, 7
    %v1223 = vmul.f32 %v1211, %v1221
    %v1224 = vadd.f32 %v1220, %v1223
    %1225 = vst [vmem:[#allocation11] sm:$0x80] %v1224
    %1226 = vst [vmem:[#allocation2 - $0x7] sm:$0x80] %v1224
    // Predicated region
    $region34: #{_encode_sequence_padded.1} parent=1 // pred_check
      _
    $region35: #{_encode_sequence_padded.1} parent=1 // pred_check_branch
      %1228 = sbr.rel (0) target = $region37
    $region36: #{_encode_sequence_padded.1} parent=1 // pred_region
      %1230 = vsyncadd [#allocation7], 0
      %s1232 = sshll.u32 [#allocation11], 4
      %s1233 = int_to_ptr.vmem [resolvable:$true] %s1232
      %s1234 = sshll.u32 %s5, 4
      %s1235 = int_to_ptr.hbm [resolvable:$true] %s1234
      %1237 = dma.vmem_to_hbm [thread:$0]  %s1233, 128, %s1235, [#allocation7]
    $region37: #{_encode_sequence_padded.1} parent=1 // pred_fallthru
      _
    // Predicated region
    $region38: #{_encode_sequence_padded.1} parent=1 // pred_check
      _
    $region39: #{_encode_sequence_padded.1} parent=1 // pred_check_branch
      %1239 = sbr.rel (0) target = $region41
    $region40: #{_encode_sequence_padded.1} parent=1 // pred_region
      %1241 = dma.done [#allocation7], 128
    $region41: #{_encode_sequence_padded.1} parent=1 // pred_fallthru
      _
    %1242 = vsyncpa [#allocation6], 1
    %1243 = vsyncpa [#allocation9], 1
    %1244 = vsyncpa [#allocation7], 1

</llo_original>
